<compile_context>
chip_gen: v5e
topology: v5e:2x2
jax: 0.10.0
libtpu: 0.0.40
codegen_flags: <defaults>
</compile_context>

<pallas_src>
import jax
import jax.numpy as jnp
from jax.experimental import pallas as pl
from jax.experimental.pallas import tpu as pltpu

EPS = 1e-6
_GELU_C = 0.7978845608028654  # sqrt(2/pi)


def _ceil_to(a, m):
    return ((a + m - 1) // m) * m


def _pick_row_tile(Ho, N, target=32, min_steps=8, min_rows=8):
    """Largest divisor of Ho <= target, shrunk until there are enough grid steps."""
    cands = [d for d in range(min(target, Ho), 0, -1) if Ho % d == 0]
    th = cands[0]
    for d in cands:
        th = d
        if N * (Ho // d) >= min_steps or d <= min_rows:
            break
    return th


def _pick_chunk(rows, w2p, budget_rows):
    """Largest divisor of `rows` whose chunk (d * w2p flat rows) fits the budget."""
    best = 1
    for d in range(1, rows + 1):
        if rows % d == 0 and d * w2p <= budget_rows:
            best = d
    return best


def _vmem_limit_bytes(Mp, Kp, Th, Wo, Cout, Ccp, MA, MB, cdt, out_dtype):
    cb = jnp.dtype(cdt).itemsize
    ob = jnp.dtype(out_dtype).itemsize
    lane = lambda c: _ceil_to(max(c, 1), 128)
    sub = lambda r: _ceil_to(max(r, 1), 8)
    est = 0
    est += 2 * sub(Mp) * lane(Kp) * cb            # im2col tile (double buffered)
    est += 2 * sub(Mp) * lane(1) * cb             # validity-mask tile
    est += 2 * sub(Kp) * lane(Ccp) * cb           # conv1 weights
    est += 2 * 9 * sub(Ccp) * lane(Ccp) * cb      # conv2 weights
    est += 2 * 4 * sub(1) * lane(Ccp) * 4         # bias / gamma / beta / bias2
    est += 2 * Th * sub(Wo) * lane(Cout) * ob     # output tile
    est += sub(Mp + 8) * lane(Ccp) * cb           # staging scratch
    est += 6 * max(MA, MB) * lane(Ccp) * 4        # live f32 chunk temporaries
    return int(min(64 << 20, max(est + (4 << 20), 16 << 20)))


# ---------------------------------------------------------------------------
# Fused Stem kernel: conv1 (one matmul) + bias + LN + GELU + conv2 (9 taps)
# ---------------------------------------------------------------------------
def _make_stem_kernel(Th, Wo, W2p, Cout, Ccp, RA, RB, compute_dtype):
    Mp = (Th + 2) * W2p           # staged rows per tile (incl. row halo + col pad)
    MA = RA * W2p                 # conv1/LN/GELU rows per phase-A chunk
    MB = RB * W2p                 # conv2 LHS rows per phase-B chunk
    nA = (Th + 2) // RA
    nB = Th // RB
    inv_c = 1.0 / Cout

    def kernel(x_ref, m_ref, w1_ref, b1_ref, g_ref, bt_ref, w2_ref, b2_ref,
               o_ref, pad_ref):
        # x_ref : (Mp, Kp)        flat conv1 im2col for this row tile
        # m_ref : (Mp, 1)         1 inside the image, 0 on conv2's zero-pad ring
        # w1_ref: (Kp, Ccp)       conv1 weights (im2col-major)
        # w2_ref: (9, Ccp, Ccp)   conv2 weights, tap-major
        # o_ref : (Th, Wo, Cout)  output row tile (NHWC, exact channel count)
        # pad_ref: (Mp+8, Ccp)    flat, column-padded conv2 input staging buffer

        # Zero the tiny tail that the last conv2 taps over-read (results discarded).
        pad_ref[pl.ds(Mp, 8), :] = jnp.zeros((8, Ccp), compute_dtype)

        cmask = jax.lax.broadcasted_iota(jnp.int32, (1, Ccp), 1) < Cout
        w1 = w1_ref[...]
        b1 = b1_ref[...]
        gam = g_ref[...]
        bet = bt_ref[...]

        # ---- phase A: conv1 (single MXU matmul) + bias + LayerNorm + GELU,
        #      chunked over sub-rows, staged into pad_ref as compute_dtype.
        def phase_a(a, carry):
            s = pl.multiple_of(a * MA, 8)
            acc = jnp.dot(x_ref[pl.ds(s, MA), :], w1,
                          preferred_element_type=jnp.float32) + b1
            mean = jnp.sum(jnp.where(cmask, acc, 0.0), axis=-1,
                           keepdims=True) * inv_c
            xc = jnp.where(cmask, acc - mean, 0.0)
            var = jnp.sum(xc * xc, axis=-1, keepdims=True) * inv_c
            y = xc * jax.lax.rsqrt(var + EPS) * gam + bet
            # GELU (tanh approximation; see module TODO)
            y = 0.5 * y * (1.0 + jnp.tanh(_GELU_C * (y + 0.044715 * (y * y * y))))
            y = y * m_ref[pl.ds(s, MA), :]            # zero conv2's padding ring
            pad_ref[pl.ds(s, MA), :] = y.astype(compute_dtype)
            return carry

        jax.lax.fori_loop(0, nA, phase_a, 0)

        b2 = b2_ref[...]

        # ---- phase B: conv2 = 9 contiguous-slice MXU matmuls, chunked over
        #      output rows; junk columns (>= Wo) are dropped at the store.
        def phase_b(b, carry):
            s = pl.multiple_of(b * MB, 8)
            acc2 = jnp.zeros((MB, Ccp), jnp.float32)
            for t in range(9):
                kh, kw = divmod(t, 3)
                a2 = pad_ref[pl.ds(s + kh * W2p + kw, MB), :]
                acc2 = acc2 + jnp.dot(a2, w2_ref[t],
                                      preferred_element_type=jnp.float32)
            acc2 = acc2 + b2
            out = acc2.reshape(RB, W2p, Ccp)[:, :Wo, :Cout]
            o_ref[pl.ds(b * RB, RB), :, :] = out.astype(o_ref.dtype)
            return carry

        jax.lax.fori_loop(0, nB, phase_b, 0)

    return kernel


# ---------------------------------------------------------------------------
# One-time weight preparation (PyTorch layouts in, kernel layouts out)
# ---------------------------------------------------------------------------
def prepare_stem_params(w1, b1, gamma, beta, w2, b2, *, compute_dtype=jnp.bfloat16):
    Cout, Cin, kh, kw = w1.shape
    assert (kh, kw) == (3, 3) and w2.shape == (Cout, Cout, 3, 3)
    K = 9 * Cin
    Kp = _ceil_to(K, 8)
    Ccp = _ceil_to(Cout, 128)

    w1m = jnp.transpose(w1, (2, 3, 1, 0)).reshape(K, Cout).astype(jnp.float32)
    w1m = jnp.zeros((Kp, Ccp), jnp.float32).at[:K, :Cout].set(w1m)
    w2m = jnp.transpose(w2, (2, 3, 1, 0)).reshape(9, Cout, Cout).astype(jnp.float32)
    w2m = jnp.zeros((9, Ccp, Ccp), jnp.float32).at[:, :Cout, :Cout].set(w2m)

    def vec(v):
        return jnp.zeros((1, Ccp), jnp.float32).at[0, :Cout].set(v.astype(jnp.float32))

    return dict(
        w1m=w1m.astype(compute_dtype), w2m=w2m.astype(compute_dtype),
        b1=vec(b1), gamma=vec(gamma), beta=vec(beta), b2=vec(b2),
        Cin=Cin, Cout=Cout, Kp=Kp, Ccp=Ccp, compute_dtype=compute_dtype)


# ---------------------------------------------------------------------------
# NHWC forward (native layout for the kernel)
# ---------------------------------------------------------------------------
def stem_forward_nhwc(x, params, *, out_dtype=None, row_tile_target=32,
                      chunk_budget_rows=512):
    N, H, W, Cin = x.shape
    assert Cin == params["Cin"], "channel mismatch"
    assert H % 2 == 0 and W % 2 == 0, "Stem expects even spatial dims"
    Cout, Kp, Ccp = params["Cout"], params["Kp"], params["Ccp"]
    cdt = params["compute_dtype"]
    if out_dtype is None:
        out_dtype = cdt

    K = 9 * Cin
    Ho, Wo = H // 2, W // 2
    Th = _pick_row_tile(Ho, N, target=row_tile_target)
    Rt = Ho // Th
    W2p = _ceil_to(Wo + 2, 8)         # column-padded pixel-row width (sublane aligned)
    Mp = (Th + 2) * W2p
    RA = _pick_chunk(Th + 2, W2p, chunk_budget_rows)
    RB = _pick_chunk(Th, W2p, chunk_budget_rows)

    # ---- conv1 im2col (3x3, stride 2), with conv2's zero row/col padding frame
    #      and per-row-tile halo duplication baked in (layout-only XLA glue).
    xp = jnp.pad(x, ((0, 0), (1, 1), (1, 1), (0, 0)))
    pats = jnp.concatenate(
        [xp[:, kh:kh + 2 * Ho:2, kw:kw + 2 * Wo:2, :]
         for kh in range(3) for kw in range(3)], axis=-1)            # (N,Ho,Wo,K)
    pats = jnp.pad(pats, ((0, 0), (1, 1), (1, W2p - Wo - 1), (0, Kp - K)))
    tiles = jnp.stack([pats[:, r * Th:r * Th + Th + 2] for r in range(Rt)], axis=1)
    tiles = tiles.reshape(N, Rt, Mp, Kp).astype(cdt)

    # ---- validity mask: 1 inside the image, 0 on conv2's zero-padding ring
    gr = jnp.arange(Rt)[:, None] * Th + jnp.arange(Th + 2)[None, :] - 1
    rmask = (gr >= 0) & (gr < Ho)                                     # (Rt, Th+2)
    cols = jnp.arange(W2p)
    cmask = (cols >= 1) & (cols <= Wo)                                # (W2p,)
    mask = (rmask[:, :, None] & cmask[None, None, :]).reshape(Rt, Mp, 1).astype(cdt)

    kernel = _make_stem_kernel(Th, Wo, W2p, Cout, Ccp, RA, RB, cdt)
    vmem_limit = _vmem_limit_bytes(Mp, Kp, Th, Wo, Cout, Ccp,
                                   RA * W2p, RB * W2p, cdt, out_dtype)

    out = pl.pallas_call(
        kernel,
        out_shape=jax.ShapeDtypeStruct((N, Ho, Wo, Cout), out_dtype),
        grid_spec=pltpu.PrefetchScalarGridSpec(
            num_scalar_prefetch=0,
            grid=(N, Rt),
            in_specs=[
                pl.BlockSpec((None, None, Mp, Kp), lambda n, r: (n, r, 0, 0)),
                pl.BlockSpec((None, Mp, 1), lambda n, r: (r, 0, 0)),
                pl.BlockSpec((Kp, Ccp), lambda n, r: (0, 0)),
                pl.BlockSpec((1, Ccp), lambda n, r: (0, 0)),
                pl.BlockSpec((1, Ccp), lambda n, r: (0, 0)),
                pl.BlockSpec((1, Ccp), lambda n, r: (0, 0)),
                pl.BlockSpec((9, Ccp, Ccp), lambda n, r: (0, 0, 0)),
                pl.BlockSpec((1, Ccp), lambda n, r: (0, 0)),
            ],
            out_specs=pl.BlockSpec((None, Th, Wo, Cout), lambda n, r: (n, r, 0, 0)),
            scratch_shapes=[pltpu.VMEM((Mp + 8, Ccp), cdt)],
        ),
        compiler_params=pltpu.CompilerParams(
            dimension_semantics=("parallel", "parallel"),
            vmem_limit_bytes=vmem_limit,
        ),
    )(tiles, mask, params["w1m"], params["b1"], params["gamma"],
      params["beta"], params["w2m"], params["b2"])
    return out


# ---------------------------------------------------------------------------
# PyTorch-layout convenience wrapper (NCHW in / NCHW out, OIHW weights)
# ---------------------------------------------------------------------------
def stem_forward(x_nchw, w1, b1, gamma, beta, w2, b2, *,
                 compute_dtype=jnp.bfloat16, out_dtype=None, **kwargs):
    params = prepare_stem_params(w1, b1, gamma, beta, w2, b2,
                                 compute_dtype=compute_dtype)
    y = stem_forward_nhwc(jnp.transpose(x_nchw, (0, 2, 3, 1)), params,
                          out_dtype=out_dtype, **kwargs)
    return jnp.transpose(y, (0, 3, 1, 2))


# ---------------------------------------------------------------------------
# Pure-JAX references for validation
# ---------------------------------------------------------------------------
def _gelu_tanh(x):
    return 0.5 * x * (1.0 + jnp.tanh(_GELU_C * (x + 0.044715 * x * x * x)))


def _conv(x, w, stride, **kw):
    return jax.lax.conv_general_dilated(
        x, w, (stride, stride), ((1, 1), (1, 1)),
        dimension_numbers=("NCHW", "OIHW", "NCHW"), **kw)


def stem_ref(x, w1, b1, gamma, beta, w2, b2):
    hi = jax.lax.Precision.HIGHEST
    y = _conv(x, w1, 2, precision=hi) + b1[None, :, None, None]
    mean = jnp.mean(y, axis=1, keepdims=True)
    var = jnp.mean((y - mean) ** 2, axis=1, keepdims=True)
    y = (y - mean) * jax.lax.rsqrt(var + EPS)
    y = y * gamma[None, :, None, None] + beta[None, :, None, None]
    y = _gelu_tanh(y)
    return _conv(y, w2, 1, precision=hi) + b2[None, :, None, None]


def stem_ref_bf16(x, w1, b1, gamma, beta, w2, b2):
    # mirrors the kernel's bf16-operand / f32-accumulation rounding points
    y = _conv(x.astype(jnp.bfloat16), w1.astype(jnp.bfloat16), 2,
              preferred_element_type=jnp.float32) + b1[None, :, None, None]
    mean = jnp.mean(y, axis=1, keepdims=True)
    var = jnp.mean((y - mean) ** 2, axis=1, keepdims=True)
    y = (y - mean) * jax.lax.rsqrt(var + EPS)
    y = y * gamma[None, :, None, None] + beta[None, :, None, None]
    y = _gelu_tanh(y).astype(jnp.bfloat16)
    return _conv(y, w2.astype(jnp.bfloat16), 1,
                 preferred_element_type=jnp.float32) + b2[None, :, None, None]


# ---------------------------------------------------------------------------
if __name__ == "__main__":
    N, C_IN, H, W = 2, 4, 32, 32     # 2 row tiles -> halo / multi-tile path exercised
    C_OUT = 32

    key = jax.random.PRNGKey(0)
    ks = jax.random.split(key, 7)
    x = jax.random.normal(ks[0], (N, C_IN, H, W), jnp.float32)
    w1 = 0.1 * jax.random.normal(ks[1], (C_OUT, C_IN, 3, 3), jnp.float32)
    b1 = 0.1 * jax.random.normal(ks[2], (C_OUT,), jnp.float32)
    gamma = 1.0 + 0.1 * jax.random.normal(ks[3], (C_OUT,), jnp.float32)
    beta = 0.1 * jax.random.normal(ks[4], (C_OUT,), jnp.float32)
    w2 = 0.1 * jax.random.normal(ks[5], (C_OUT, C_OUT, 3, 3), jnp.float32)
    b2 = 0.1 * jax.random.normal(ks[6], (C_OUT,), jnp.float32)

    # 1) exact-math path (f32 operands), tiny chunk budget so the multi-chunk
    #    in-kernel loops are exercised; tight tolerance (per review).
    out_f32 = jax.block_until_ready(
        stem_forward(x, w1, b1, gamma, beta, w2, b2,
                     compute_dtype=jnp.float32, out_dtype=jnp.float32,
                     chunk_budget_rows=48))
    ref = jax.block_until_ready(stem_ref(x, w1, b1, gamma, beta, w2, b2))
    assert out_f32.shape == (N, C_OUT, H // 2, W // 2), out_f32.shape
    err = float(jnp.max(jnp.abs(out_f32 - ref)))
    assert err < 1e-3, f"f32 path max abs err {err}"

    # 2) bf16 MXU operands / f32 accumulation, f32 output, vs a reference with
    #    the same operand-rounding points.
    out_bf = jax.block_until_ready(
        stem_forward(x, w1, b1, gamma, beta, w2, b2,
                     compute_dtype=jnp.bfloat16, out_dtype=jnp.float32))
    ref_q = jax.block_until_ready(stem_ref_bf16(x, w1, b1, gamma, beta, w2, b2))
    err_q = float(jnp.max(jnp.abs(out_bf - ref_q)))
    assert err_q < 1e-2, f"bf16 compute path max abs err {err_q}"

    # 3) default fast config: bf16 compute + bf16 output (halved HBM stores).
    out_fast = jax.block_until_ready(stem_forward(x, w1, b1, gamma, beta, w2, b2))
    assert out_fast.dtype == jnp.bfloat16, out_fast.dtype
    err_o = float(jnp.max(jnp.abs(out_fast.astype(jnp.float32) - out_bf)))
    assert err_o < 5e-2, f"bf16 output rounding err {err_o}"

    print("KERNEL_OK")
</pallas_src>

<mosaic_0001>
module attributes {stable_mosaic.version = 11 : i64} {
  func.func @kernel(%arg0: i32, %arg1: i32, %arg2: memref<1x1x240x40xf32, #tpu.memory_space<vmem>>, %arg3: memref<1x240x1xf32, #tpu.memory_space<vmem>>, %arg4: memref<40x128xf32, #tpu.memory_space<vmem>>, %arg5: memref<1x128xf32, #tpu.memory_space<vmem>>, %arg6: memref<1x128xf32, #tpu.memory_space<vmem>>, %arg7: memref<1x128xf32, #tpu.memory_space<vmem>>, %arg8: memref<9x128x128xf32, #tpu.memory_space<vmem>>, %arg9: memref<1x128xf32, #tpu.memory_space<vmem>>, %arg10: memref<1x8x16x32xf32, #tpu.memory_space<vmem>>, %arg11: memref<248x128xf32, #tpu.memory_space<vmem>>) attributes {dimension_semantics = [#tpu.dimension_semantics<parallel>, #tpu.dimension_semantics<parallel>], iteration_bounds = array<i64: 2, 2>, scalar_prefetch = 0 : i64, scratch_operands = 1 : i64, tpu.core_type = #tpu.core_type<tc>, window_params = [{transform_indices = @transform_0, window_bounds = array<i64: 1, 1, 240, 40>}, {transform_indices = @transform_1, window_bounds = array<i64: 1, 240, 1>}, {pipeline_mode = #tpu.pipeline_mode<synchronous>, transform_indices = @transform_2, window_bounds = array<i64: 40, 128>}, {pipeline_mode = #tpu.pipeline_mode<synchronous>, transform_indices = @transform_3, window_bounds = array<i64: 1, 128>}, {pipeline_mode = #tpu.pipeline_mode<synchronous>, transform_indices = @transform_4, window_bounds = array<i64: 1, 128>}, {pipeline_mode = #tpu.pipeline_mode<synchronous>, transform_indices = @transform_5, window_bounds = array<i64: 1, 128>}, {pipeline_mode = #tpu.pipeline_mode<synchronous>, transform_indices = @transform_6, window_bounds = array<i64: 9, 128, 128>}, {pipeline_mode = #tpu.pipeline_mode<synchronous>, transform_indices = @transform_7, window_bounds = array<i64: 1, 128>}, {transform_indices = @transform_8, window_bounds = array<i64: 1, 8, 16, 32>}]} {
    %cst = arith.constant 0.000000e+00 : f32
    %0 = vector.broadcast %cst : f32 to vector<8x128xf32>
    %c240 = arith.constant 240 : index
    %c0 = arith.constant 0 : index
    %1 = vector.load %arg11[%c240, %c0] : memref<248x128xf32, #tpu.memory_space<vmem>>, vector<8x128xf32>
    tpu.vector_store %arg11[%c240, %c0], %0 {strides = array<i32>} : memref<248x128xf32, #tpu.memory_space<vmem>>, vector<8x128xf32>,
    %2 = tpu.iota {dimensions = array<i32: 1>} : vector<1x128xi32>
    %c32_i32 = arith.constant 32 : i32
    %3 = vector.broadcast %c32_i32 : i32 to vector<1x128xi32>
    %4 = arith.cmpi slt, %2, %3 : vector<1x128xi32>
    %c0_0 = arith.constant 0 : index
    %c0_1 = arith.constant 0 : index
    %5 = vector.load %arg4[%c0_0, %c0_1] : memref<40x128xf32, #tpu.memory_space<vmem>>, vector<40x128xf32>
    %c0_2 = arith.constant 0 : index
    %c0_3 = arith.constant 0 : index
    %6 = vector.load %arg5[%c0_2, %c0_3] : memref<1x128xf32, #tpu.memory_space<vmem>>, vector<1x128xf32>
    %c0_4 = arith.constant 0 : index
    %c0_5 = arith.constant 0 : index
    %7 = vector.load %arg6[%c0_4, %c0_5] : memref<1x128xf32, #tpu.memory_space<vmem>>, vector<1x128xf32>
    %c0_6 = arith.constant 0 : index
    %c0_7 = arith.constant 0 : index
    %8 = vector.load %arg7[%c0_6, %c0_7] : memref<1x128xf32, #tpu.memory_space<vmem>>, vector<1x128xf32>
    %c0_i32 = arith.constant 0 : i32
    %c5_i32 = arith.constant 5 : i32
    %9 = arith.addi %c0_i32, %c5_i32 : i32
    %c1_i32 = arith.constant 1 : i32
    scf.for %arg12 = %c0_i32 to %9 step %c1_i32  : i32 {
      %c48_i32 = arith.constant 48 : i32
      %12 = arith.muli %arg12, %c48_i32 : i32
      %13 = tpu.assume_multiple %12, 8 : i32
      %c0_14 = arith.constant 0 : index
      %c0_15 = arith.constant 0 : index
      %14 = arith.index_cast %13 : i32 to index
      %c0_16 = arith.constant 0 : index
      %15 = vector.load %arg2[%c0_14, %c0_15, %14, %c0_16] : memref<1x1x240x40xf32, #tpu.memory_space<vmem>>, vector<1x1x48x40xf32>
      %16 = vector.shape_cast %15 : vector<1x1x48x40xf32> to vector<48x40xf32>
      %cst_17 = arith.constant dense<0.000000e+00> : vector<48x128xf32>
      %17 = tpu.matmul %16, %5, %cst_17 {dimension_numbers = #tpu.dot_dimension_numbers<[1], [0], [0], [1], [0, 0, 1, 1], [], []>} : vector<48x40xf32>, vector<40x128xf32>, vector<48x128xf32> -> vector<48x128xf32>
      %18 = vector.broadcast %6 : vector<1x128xf32> to vector<48x128xf32>
      %19 = arith.addf %17, %18 : vector<48x128xf32>
      %cst_18 = arith.constant 0.000000e+00 : f32
      %20 = vector.shape_cast %4 : vector<1x128xi1> to vector<1x128xi1>
      %21 = vector.broadcast %20 : vector<1x128xi1> to vector<48x128xi1>
      %22 = vector.broadcast %cst_18 : f32 to vector<48x128xf32>
      %23 = arith.select %21, %19, %22 : vector<48x128xi1>, vector<48x128xf32>
      %cst_19 = arith.constant dense<0.000000e+00> : vector<48xf32>
      %24 = vector.multi_reduction <add>, %23, %cst_19 [1] : vector<48x128xf32> to vector<48xf32>
      %25 = vector.shape_cast %24 : vector<48xf32> to vector<48x1xf32>
      %cst_20 = arith.constant 3.125000e-02 : f32
      %26 = vector.broadcast %cst_20 : f32 to vector<48x1xf32>
      %27 = arith.mulf %25, %26 : vector<48x1xf32>
      %28 = vector.broadcast %27 : vector<48x1xf32> to vector<48x128xf32>
      %29 = arith.subf %19, %28 : vector<48x128xf32>
      %cst_21 = arith.constant 0.000000e+00 : f32
      %30 = vector.shape_cast %4 : vector<1x128xi1> to vector<1x128xi1>
      %31 = vector.broadcast %30 : vector<1x128xi1> to vector<48x128xi1>
      %32 = vector.broadcast %cst_21 : f32 to vector<48x128xf32>
      %33 = arith.select %31, %29, %32 : vector<48x128xi1>, vector<48x128xf32>
      %34 = arith.mulf %33, %33 : vector<48x128xf32>
      %cst_22 = arith.constant dense<0.000000e+00> : vector<48xf32>
      %35 = vector.multi_reduction <add>, %34, %cst_22 [1] : vector<48x128xf32> to vector<48xf32>
      %36 = vector.shape_cast %35 : vector<48xf32> to vector<48x1xf32>
      %cst_23 = arith.constant 3.125000e-02 : f32
      %37 = vector.broadcast %cst_23 : f32 to vector<48x1xf32>
      %38 = arith.mulf %36, %37 : vector<48x1xf32>
      %cst_24 = arith.constant 9.99999997E-7 : f32
      %39 = vector.broadcast %cst_24 : f32 to vector<48x1xf32>
      %40 = arith.addf %38, %39 : vector<48x1xf32>
      %41 = math.rsqrt %40 : vector<48x1xf32>
      %42 = vector.broadcast %41 : vector<48x1xf32> to vector<48x128xf32>
      %43 = arith.mulf %33, %42 : vector<48x128xf32>
      %44 = vector.broadcast %7 : vector<1x128xf32> to vector<48x128xf32>
      %45 = arith.mulf %43, %44 : vector<48x128xf32>
      %46 = vector.broadcast %8 : vector<1x128xf32> to vector<48x128xf32>
      %47 = arith.addf %45, %46 : vector<48x128xf32>
      %cst_25 = arith.constant 5.000000e-01 : f32
      %48 = vector.broadcast %cst_25 : f32 to vector<48x128xf32>
      %49 = arith.mulf %48, %47 : vector<48x128xf32>
      %50 = arith.mulf %47, %47 : vector<48x128xf32>
      %51 = arith.mulf %50, %47 : vector<48x128xf32>
      %cst_26 = arith.constant 4.471500e-02 : f32
      %52 = vector.broadcast %cst_26 : f32 to vector<48x128xf32>
      %53 = arith.mulf %52, %51 : vector<48x128xf32>
      %54 = arith.addf %47, %53 : vector<48x128xf32>
      %cst_27 = arith.constant 0.797884583 : f32
      %55 = vector.broadcast %cst_27 : f32 to vector<48x128xf32>
      %56 = arith.mulf %55, %54 : vector<48x128xf32>
      %57 = math.tanh %56 : vector<48x128xf32>
      %cst_28 = arith.constant 1.000000e+00 : f32
      %58 = vector.broadcast %cst_28 : f32 to vector<48x128xf32>
      %59 = arith.addf %58, %57 : vector<48x128xf32>
      %60 = arith.mulf %49, %59 : vector<48x128xf32>
      %c0_29 = arith.constant 0 : index
      %61 = arith.index_cast %13 : i32 to index
      %c0_30 = arith.constant 0 : index
      %62 = vector.load %arg3[%c0_29, %61, %c0_30] : memref<1x240x1xf32, #tpu.memory_space<vmem>>, vector<1x48x1xf32>
      %63 = vector.shape_cast %62 : vector<1x48x1xf32> to vector<48x1xf32>
      %64 = vector.broadcast %63 : vector<48x1xf32> to vector<48x128xf32>
      %65 = arith.mulf %60, %64 : vector<48x128xf32>
      %66 = arith.index_cast %13 : i32 to index
      %c0_31 = arith.constant 0 : index
      %67 = vector.load %arg11[%66, %c0_31] : memref<248x128xf32, #tpu.memory_space<vmem>>, vector<48x128xf32>
      tpu.vector_store %arg11[%66, %c0_31], %65 {strides = array<i32>} : memref<248x128xf32, #tpu.memory_space<vmem>>, vector<48x128xf32>,
    }
    %c5_i32_8 = arith.constant 5 : i32
    %c0_9 = arith.constant 0 : index
    %c0_10 = arith.constant 0 : index
    %10 = vector.load %arg9[%c0_9, %c0_10] : memref<1x128xf32, #tpu.memory_space<vmem>>, vector<1x128xf32>
    %c0_i32_11 = arith.constant 0 : i32
    %c4_i32 = arith.constant 4 : i32
    %11 = arith.addi %c0_i32_11, %c4_i32 : i32
    %c1_i32_12 = arith.constant 1 : i32
    scf.for %arg12 = %c0_i32_11 to %11 step %c1_i32_12  : i32 {
      %c48_i32 = arith.constant 48 : i32
      %12 = arith.muli %arg12, %c48_i32 : i32
      %13 = tpu.assume_multiple %12, 8 : i32
      %cst_14 = arith.constant 0.000000e+00 : f32
      %14 = vector.broadcast %cst_14 : f32 to vector<48x128xf32>
      %c0_i32_15 = arith.constant 0 : i32
      %15 = arith.addi %13, %c0_i32_15 : i32
      %c0_i32_16 = arith.constant 0 : i32
      %16 = arith.addi %15, %c0_i32_16 : i32
      %17 = arith.index_cast %16 : i32 to index
      %c0_17 = arith.constant 0 : index
      %18 = vector.load %arg11[%17, %c0_17] : memref<248x128xf32, #tpu.memory_space<vmem>>, vector<48x128xf32>
      %c0_18 = arith.constant 0 : index
      %c0_19 = arith.constant 0 : index
      %c0_20 = arith.constant 0 : index
      %19 = vector.load %arg8[%c0_18, %c0_19, %c0_20] : memref<9x128x128xf32, #tpu.memory_space<vmem>>, vector<1x128x128xf32>
      %20 = vector.shape_cast %19 : vector<1x128x128xf32> to vector<128x128xf32>
      %cst_21 = arith.constant dense<0.000000e+00> : vector<48x128xf32>
      %21 = tpu.matmul %18, %20, %cst_21 {dimension_numbers = #tpu.dot_dimension_numbers<[1], [0], [0], [1], [0, 0, 1, 1], [], []>} : vector<48x128xf32>, vector<128x128xf32>, vector<48x128xf32> -> vector<48x128xf32>
      %22 = arith.addf %14, %21 : vector<48x128xf32>
      %c0_i32_22 = arith.constant 0 : i32
      %23 = arith.addi %13, %c0_i32_22 : i32
      %c1_i32_23 = arith.constant 1 : i32
      %24 = arith.addi %23, %c1_i32_23 : i32
      %25 = arith.index_cast %24 : i32 to index
      %c0_24 = arith.constant 0 : index
      %26 = vector.load %arg11[%25, %c0_24] : memref<248x128xf32, #tpu.memory_space<vmem>>, vector<48x128xf32>
      %c1 = arith.constant 1 : index
      %c0_25 = arith.constant 0 : index
      %c0_26 = arith.constant 0 : index
      %27 = vector.load %arg8[%c1, %c0_25, %c0_26] : memref<9x128x128xf32, #tpu.memory_space<vmem>>, vector<1x128x128xf32>
      %28 = vector.shape_cast %27 : vector<1x128x128xf32> to vector<128x128xf32>
      %cst_27 = arith.constant dense<0.000000e+00> : vector<48x128xf32>
      %29 = tpu.matmul %26, %28, %cst_27 {dimension_numbers = #tpu.dot_dimension_numbers<[1], [0], [0], [1], [0, 0, 1, 1], [], []>} : vector<48x128xf32>, vector<128x128xf32>, vector<48x128xf32> -> vector<48x128xf32>
      %30 = arith.addf %22, %29 : vector<48x128xf32>
      %c0_i32_28 = arith.constant 0 : i32
      %31 = arith.addi %13, %c0_i32_28 : i32
      %c2_i32 = arith.constant 2 : i32
      %32 = arith.addi %31, %c2_i32 : i32
      %33 = arith.index_cast %32 : i32 to index
      %c0_29 = arith.constant 0 : index
      %34 = vector.load %arg11[%33, %c0_29] : memref<248x128xf32, #tpu.memory_space<vmem>>, vector<48x128xf32>
      %c2 = arith.constant 2 : index
      %c0_30 = arith.constant 0 : index
      %c0_31 = arith.constant 0 : index
      %35 = vector.load %arg8[%c2, %c0_30, %c0_31] : memref<9x128x128xf32, #tpu.memory_space<vmem>>, vector<1x128x128xf32>
      %36 = vector.shape_cast %35 : vector<1x128x128xf32> to vector<128x128xf32>
      %cst_32 = arith.constant dense<0.000000e+00> : vector<48x128xf32>
      %37 = tpu.matmul %34, %36, %cst_32 {dimension_numbers = #tpu.dot_dimension_numbers<[1], [0], [0], [1], [0, 0, 1, 1], [], []>} : vector<48x128xf32>, vector<128x128xf32>, vector<48x128xf32> -> vector<48x128xf32>
      %38 = arith.addf %30, %37 : vector<48x128xf32>
      %c24_i32 = arith.constant 24 : i32
      %39 = arith.addi %13, %c24_i32 : i32
      %c0_i32_33 = arith.constant 0 : i32
      %40 = arith.addi %39, %c0_i32_33 : i32
      %41 = arith.index_cast %40 : i32 to index
      %c0_34 = arith.constant 0 : index
      %42 = vector.load %arg11[%41, %c0_34] : memref<248x128xf32, #tpu.memory_space<vmem>>, vector<48x128xf32>
      %c3 = arith.constant 3 : index
      %c0_35 = arith.constant 0 : index
      %c0_36 = arith.constant 0 : index
      %43 = vector.load %arg8[%c3, %c0_35, %c0_36] : memref<9x128x128xf32, #tpu.memory_space<vmem>>, vector<1x128x128xf32>
      %44 = vector.shape_cast %43 : vector<1x128x128xf32> to vector<128x128xf32>
      %cst_37 = arith.constant dense<0.000000e+00> : vector<48x128xf32>
      %45 = tpu.matmul %42, %44, %cst_37 {dimension_numbers = #tpu.dot_dimension_numbers<[1], [0], [0], [1], [0, 0, 1, 1], [], []>} : vector<48x128xf32>, vector<128x128xf32>, vector<48x128xf32> -> vector<48x128xf32>
      %46 = arith.addf %38, %45 : vector<48x128xf32>
      %c24_i32_38 = arith.constant 24 : i32
      %47 = arith.addi %13, %c24_i32_38 : i32
      %c1_i32_39 = arith.constant 1 : i32
      %48 = arith.addi %47, %c1_i32_39 : i32
      %49 = arith.index_cast %48 : i32 to index
      %c0_40 = arith.constant 0 : index
      %50 = vector.load %arg11[%49, %c0_40] : memref<248x128xf32, #tpu.memory_space<vmem>>, vector<48x128xf32>
      %c4 = arith.constant 4 : index
      %c0_41 = arith.constant 0 : index
      %c0_42 = arith.constant 0 : index
      %51 = vector.load %arg8[%c4, %c0_41, %c0_42] : memref<9x128x128xf32, #tpu.memory_space<vmem>>, vector<1x128x128xf32>
      %52 = vector.shape_cast %51 : vector<1x128x128xf32> to vector<128x128xf32>
      %cst_43 = arith.constant dense<0.000000e+00> : vector<48x128xf32>
      %53 = tpu.matmul %50, %52, %cst_43 {dimension_numbers = #tpu.dot_dimension_numbers<[1], [0], [0], [1], [0, 0, 1, 1], [], []>} : vector<48x128xf32>, vector<128x128xf32>, vector<48x128xf32> -> vector<48x128xf32>
      %54 = arith.addf %46, %53 : vector<48x128xf32>
      %c24_i32_44 = arith.constant 24 : i32
      %55 = arith.addi %13, %c24_i32_44 : i32
      %c2_i32_45 = arith.constant 2 : i32
      %56 = arith.addi %55, %c2_i32_45 : i32
      %57 = arith.index_cast %56 : i32 to index
      %c0_46 = arith.constant 0 : index
      %58 = vector.load %arg11[%57, %c0_46] : memref<248x128xf32, #tpu.memory_space<vmem>>, vector<48x128xf32>
      %c5 = arith.constant 5 : index
      %c0_47 = arith.constant 0 : index
      %c0_48 = arith.constant 0 : index
      %59 = vector.load %arg8[%c5, %c0_47, %c0_48] : memref<9x128x128xf32, #tpu.memory_space<vmem>>, vector<1x128x128xf32>
      %60 = vector.shape_cast %59 : vector<1x128x128xf32> to vector<128x128xf32>
      %cst_49 = arith.constant dense<0.000000e+00> : vector<48x128xf32>
      %61 = tpu.matmul %58, %60, %cst_49 {dimension_numbers = #tpu.dot_dimension_numbers<[1], [0], [0], [1], [0, 0, 1, 1], [], []>} : vector<48x128xf32>, vector<128x128xf32>, vector<48x128xf32> -> vector<48x128xf32>
      %62 = arith.addf %54, %61 : vector<48x128xf32>
      %c48_i32_50 = arith.constant 48 : i32
      %63 = arith.addi %13, %c48_i32_50 : i32
      %c0_i32_51 = arith.constant 0 : i32
      %64 = arith.addi %63, %c0_i32_51 : i32
      %65 = arith.index_cast %64 : i32 to index
      %c0_52 = arith.constant 0 : index
      %66 = vector.load %arg11[%65, %c0_52] : memref<248x128xf32, #tpu.memory_space<vmem>>, vector<48x128xf32>
      %c6 = arith.constant 6 : index
      %c0_53 = arith.constant 0 : index
      %c0_54 = arith.constant 0 : index
      %67 = vector.load %arg8[%c6, %c0_53, %c0_54] : memref<9x128x128xf32, #tpu.memory_space<vmem>>, vector<1x128x128xf32>
      %68 = vector.shape_cast %67 : vector<1x128x128xf32> to vector<128x128xf32>
      %cst_55 = arith.constant dense<0.000000e+00> : vector<48x128xf32>
      %69 = tpu.matmul %66, %68, %cst_55 {dimension_numbers = #tpu.dot_dimension_numbers<[1], [0], [0], [1], [0, 0, 1, 1], [], []>} : vector<48x128xf32>, vector<128x128xf32>, vector<48x128xf32> -> vector<48x128xf32>
      %70 = arith.addf %62, %69 : vector<48x128xf32>
      %c48_i32_56 = arith.constant 48 : i32
      %71 = arith.addi %13, %c48_i32_56 : i32
      %c1_i32_57 = arith.constant 1 : i32
      %72 = arith.addi %71, %c1_i32_57 : i32
      %73 = arith.index_cast %72 : i32 to index
      %c0_58 = arith.constant 0 : index
      %74 = vector.load %arg11[%73, %c0_58] : memref<248x128xf32, #tpu.memory_space<vmem>>, vector<48x128xf32>
      %c7 = arith.constant 7 : index
      %c0_59 = arith.constant 0 : index
      %c0_60 = arith.constant 0 : index
      %75 = vector.load %arg8[%c7, %c0_59, %c0_60] : memref<9x128x128xf32, #tpu.memory_space<vmem>>, vector<1x128x128xf32>
      %76 = vector.shape_cast %75 : vector<1x128x128xf32> to vector<128x128xf32>
      %cst_61 = arith.constant dense<0.000000e+00> : vector<48x128xf32>
      %77 = tpu.matmul %74, %76, %cst_61 {dimension_numbers = #tpu.dot_dimension_numbers<[1], [0], [0], [1], [0, 0, 1, 1], [], []>} : vector<48x128xf32>, vector<128x128xf32>, vector<48x128xf32> -> vector<48x128xf32>
      %78 = arith.addf %70, %77 : vector<48x128xf32>
      %c48_i32_62 = arith.constant 48 : i32
      %79 = arith.addi %13, %c48_i32_62 : i32
      %c2_i32_63 = arith.constant 2 : i32
      %80 = arith.addi %79, %c2_i32_63 : i32
      %81 = arith.index_cast %80 : i32 to index
      %c0_64 = arith.constant 0 : index
      %82 = vector.load %arg11[%81, %c0_64] : memref<248x128xf32, #tpu.memory_space<vmem>>, vector<48x128xf32>
      %c8 = arith.constant 8 : index
      %c0_65 = arith.constant 0 : index
      %c0_66 = arith.constant 0 : index
      %83 = vector.load %arg8[%c8, %c0_65, %c0_66] : memref<9x128x128xf32, #tpu.memory_space<vmem>>, vector<1x128x128xf32>
      %84 = vector.shape_cast %83 : vector<1x128x128xf32> to vector<128x128xf32>
      %cst_67 = arith.constant dense<0.000000e+00> : vector<48x128xf32>
      %85 = tpu.matmul %82, %84, %cst_67 {dimension_numbers = #tpu.dot_dimension_numbers<[1], [0], [0], [1], [0, 0, 1, 1], [], []>} : vector<48x128xf32>, vector<128x128xf32>, vector<48x128xf32> -> vector<48x128xf32>
      %86 = arith.addf %78, %85 : vector<48x128xf32>
      %87 = vector.broadcast %10 : vector<1x128xf32> to vector<48x128xf32>
      %88 = arith.addf %86, %87 : vector<48x128xf32>
      %89 = vector.shape_cast %88 : vector<48x128xf32> to vector<2x24x128xf32>
      %90 = vector.extract_strided_slice %89 {offsets = [0, 0, 0], sizes = [2, 16, 32], strides = [1, 1, 1]} : vector<2x24x128xf32> to vector<2x16x32xf32>
      %c2_i32_68 = arith.constant 2 : i32
      %91 = arith.muli %arg12, %c2_i32_68 : i32
      %c0_69 = arith.constant 0 : index
      %92 = arith.index_cast %91 : i32 to index
      %c0_70 = arith.constant 0 : index
      %c0_71 = arith.constant 0 : index
      %93 = vector.load %arg10[%c0_69, %92, %c0_70, %c0_71] : memref<1x8x16x32xf32, #tpu.memory_space<vmem>>, vector<1x2x16x32xf32>
      %94 = vector.shape_cast %93 : vector<1x2x16x32xf32> to vector<2x16x32xf32>
      %95 = vector.shape_cast %90 : vector<2x16x32xf32> to vector<1x2x16x32xf32>
      tpu.vector_store %arg10[%c0_69, %92, %c0_70, %c0_71], %95 {strides = array<i32>} : memref<1x8x16x32xf32, #tpu.memory_space<vmem>>, vector<1x2x16x32xf32>,
    }
    %c4_i32_13 = arith.constant 4 : i32
    return
  }
  func.func @transform_0(%arg0: i32, %arg1: i32) -> (i32, i32, i32, i32) {
    %c0_i32 = arith.constant 0 : i32
    %c0_i32_0 = arith.constant 0 : i32
    %c0_i32_1 = arith.constant 0 : i32
    return %arg0, %arg1, %c0_i32, %c0_i32_0 : i32, i32, i32, i32
  }
  func.func @transform_1(%arg0: i32, %arg1: i32) -> (i32, i32, i32) {
    %c0_i32 = arith.constant 0 : i32
    %c0_i32_0 = arith.constant 0 : i32
    %c0_i32_1 = arith.constant 0 : i32
    return %arg1, %c0_i32, %c0_i32_0 : i32, i32, i32
  }
  func.func @transform_2(%arg0: i32, %arg1: i32) -> (i32, i32) {
    %c0_i32 = arith.constant 0 : i32
    %c0_i32_0 = arith.constant 0 : i32
    %c0_i32_1 = arith.constant 0 : i32
    return %c0_i32, %c0_i32_0 : i32, i32
  }
  func.func @transform_3(%arg0: i32, %arg1: i32) -> (i32, i32) {
    %c0_i32 = arith.constant 0 : i32
    %c0_i32_0 = arith.constant 0 : i32
    %c0_i32_1 = arith.constant 0 : i32
    return %c0_i32, %c0_i32_0 : i32, i32
  }
  func.func @transform_4(%arg0: i32, %arg1: i32) -> (i32, i32) {
    %c0_i32 = arith.constant 0 : i32
    %c0_i32_0 = arith.constant 0 : i32
    %c0_i32_1 = arith.constant 0 : i32
    return %c0_i32, %c0_i32_0 : i32, i32
  }
  func.func @transform_5(%arg0: i32, %arg1: i32) -> (i32, i32) {
    %c0_i32 = arith.constant 0 : i32
    %c0_i32_0 = arith.constant 0 : i32
    %c0_i32_1 = arith.constant 0 : i32
    return %c0_i32, %c0_i32_0 : i32, i32
  }
  func.func @transform_6(%arg0: i32, %arg1: i32) -> (i32, i32, i32) {
    %c0_i32 = arith.constant 0 : i32
    %c0_i32_0 = arith.constant 0 : i32
    %c0_i32_1 = arith.constant 0 : i32
    %c0_i32_2 = arith.constant 0 : i32
    return %c0_i32, %c0_i32_0, %c0_i32_1 : i32, i32, i32
  }
  func.func @transform_7(%arg0: i32, %arg1: i32) -> (i32, i32) {
    %c0_i32 = arith.constant 0 : i32
    %c0_i32_0 = arith.constant 0 : i32
    %c0_i32_1 = arith.constant 0 : i32
    return %c0_i32, %c0_i32_0 : i32, i32
  }
  func.func @transform_8(%arg0: i32, %arg1: i32) -> (i32, i32, i32, i32) {
    %c0_i32 = arith.constant 0 : i32
    %c0_i32_0 = arith.constant 0 : i32
    %c0_i32_1 = arith.constant 0 : i32
    return %arg0, %arg1, %c0_i32, %c0_i32_0 : i32, i32, i32, i32
  }
}

</mosaic_0001>

<llo_original>
// kernel: tpu_custom_call.1
$region0: #{tpu_custom_call.1}
  #allocation0 [shape = 'u32[]', space=smem, size = 0x4, offset = 0x4, fixed_abs, tag = 'smem constant byte address 0x4 - core index']
  #allocation1 [shape = 'u32[72,128]{1,0:T(1,128)}', space=vmem, size = 0x9000, scoped, tag = 'internal scratch']
  #allocation2 [shape = 'f32[248,128]{1,0:T(8,128)}', space=vmem, size = 0x1f000, scoped, tag = 'scratch operand']
  %s0 = inlined_call_operand.vmem [shape: f32[2,2,240,40], index: 0, kind: input, shape index: {}]
  %s1 = inlined_call_operand.vmem [shape: f32[2,240,1], index: 1, kind: input, shape index: {}]
  %s2 = inlined_call_operand.vmem [shape: f32[40,128], index: 2, kind: input, shape index: {}]
  %s3 = inlined_call_operand.vmem [shape: f32[1,128], index: 3, kind: input, shape index: {}]
  %s4 = inlined_call_operand.vmem [shape: f32[1,128], index: 4, kind: input, shape index: {}]
  %s5 = inlined_call_operand.vmem [shape: f32[1,128], index: 5, kind: input, shape index: {}]
  %s6 = inlined_call_operand.vmem [shape: f32[9,128,128], index: 6, kind: input, shape index: {}]
  %s7 = inlined_call_operand.vmem [shape: f32[1,128], index: 7, kind: input, shape index: {}]
  %s8 = inlined_call_operand.hbm [shape: f32[2,16,16,32], index: 8, kind: output, shape index: {}]
  %s9 = sld [smem:[#allocation0]]
  $region79: #{tpu_custom_call.1} parent=0
    _
  %s11 = ssub.s32 1, %s9
  %s12 = scalar_select 0, %s11, %s9
  $region1: #{tpu_custom_call.1} parent=0
    #allocation3 [shape = 'u8[131072]{0}', space=vmem, size = 0x20000, scoped, tag = 'output window, operand 0']
    #allocation4 [shape = 's32[2]{0}', space=sflag, size = 0x8, scoped, tag = 'scoped memory for tpu_custom_call.1']
    %13 = vsyncpa [#allocation4], 0
    %s14 = scalar_lea.sflag [#allocation4], 1
    %15 = vsyncpa %s14, 0
    loop: start=0, step=1, limit=6
    $region2: #{tpu_custom_call.1} parent=1 // loop_pre_header
      _
    $region3: #{tpu_custom_call.1} parent=1 // loop_header
      %s17 = sphi 0, %s21
      %p18 = scmp.ge.s32.totalorder %s17, 6
      %s24 = sphi 0, %s36
      %s25 = sphi 0, %s32
      %s26 = sphi 0, %s24
      %s27 = sphi 0, %s25
      %s28 = sphi 0, %s26
      %s29 = sphi 0, %s27
      %s41 = sphi 0, %s43
      %s44 = sphi 0, %s41
      %s45 = sphi 0, %s44
      %s61 = sphi 0, %s45
      %s67 = sphi 0, %s69
      %s70 = sphi 0, %s67
      %s71 = sphi 0, %s70
      %s87 = sphi 0, %s71
      %s91 = sphi 0, %s91
      %s93 = sphi 0, %s91
      %s94 = sphi 0, %s93
      %s108 = sphi 0, %s94
      %s112 = sphi 0, %s112
      %s114 = sphi 0, %s112
      %s115 = sphi 0, %s114
      %s129 = sphi 0, %s115
      %s133 = sphi 0, %s133
      %s135 = sphi 0, %s133
      %s136 = sphi 0, %s135
      %s150 = sphi 0, %s136
      %s154 = sphi 0, %s154
      %s156 = sphi 0, %s154
      %s157 = sphi 0, %s156
      %s171 = sphi 0, %s157
      %s175 = sphi 0, %s175
      %s177 = sphi 0, %s175
      %s178 = sphi 0, %s177
      %s192 = sphi 0, %s178
      %s196 = sphi 0, %s196
      %s198 = sphi 0, %s196
      %s199 = sphi 0, %s198
      %s213 = sphi 0, %s199
      %s221 = sphi 0, %s223
      %s224 = sphi 0, %s221
      %s225 = sphi 0, %s224
      %s241 = sphi 0, %s225
    $region4: #{tpu_custom_call.1} parent=1 // loop_header_branch
      %20 = sbr.rel (%p18) target = $region8
    $region5: #{tpu_custom_call.1} parent=1 // loop_body
      %s22 = ssub.s32 %s17, 1
      %s23 = ssub.s32 %s17, 2
      %s30 = sadd.s32 1, %s25
      %p31 = scmp.ge.s32.totalorder %s30, 2
      %s32 = scalar_select %p31, 0, %s30
      %s33 = sadd.s32 1, %s24
      %s34 = scalar_select %p31, %s33, %s24
      %p35 = scmp.ge.s32.totalorder %s34, 2
      %s36 = scalar_select %p35, 0, %s34
      %s37 = ssub.s32 %s24, %s36
      %s38 = ssub.s32 %s25, %s32
      %s39 = sor.u32 %s37, %s38
      %p40 = scmp.eq.s32.totalorder %s39, 0
      %s42 = sadd.s32 %s41, 1
      %s43 = scalar_select %p40, %s41, %s42
      %p46 = pneg %p40
      %p47 = scmp.eq.s32.totalorder %s17, 3
      %p48 = por %p46, %p47
      %p49 = scmp.ne.s32.totalorder %s41, %s44
      %p50 = scmp.eq.s32.totalorder %s17, 0
      %p51 = por %p49, %p50
      %p52 = scmp.ne.s32.totalorder %s41, %s44
      %p53 = scmp.eq.s32.totalorder %s22, 3
      %p54 = por %p52, %p53
      %p55 = scmp.ne.s32.totalorder %s44, %s45
      %p56 = scmp.eq.s32.totalorder %s22, 0
      %p57 = por %p55, %p56
      %p58 = scmp.ne.s32.totalorder %s44, %s45
      %p59 = scmp.eq.s32.totalorder %s23, 3
      %p60 = por %p58, %p59
      %p62 = scmp.ne.s32.totalorder %s45, %s61
      %p63 = scmp.eq.s32.totalorder %s23, 0
      %p64 = por %p62, %p63
      %s65 = ssub.s32 %s25, %s32
      %p66 = scmp.eq.s32.totalorder %s65, 0
      %s68 = sadd.s32 %s67, 1
      %s69 = scalar_select %p66, %s67, %s68
      %p72 = pneg %p66
      %p73 = scmp.eq.s32.totalorder %s17, 3
      %p74 = por %p72, %p73
      %p75 = scmp.ne.s32.totalorder %s67, %s70
      %p76 = scmp.eq.s32.totalorder %s17, 0
      %p77 = por %p75, %p76
      %p78 = scmp.ne.s32.totalorder %s67, %s70
      %p79 = scmp.eq.s32.totalorder %s22, 3
      %p80 = por %p78, %p79
      %p81 = scmp.ne.s32.totalorder %s70, %s71
      %p82 = scmp.eq.s32.totalorder %s22, 0
      %p83 = por %p81, %p82
      %p84 = scmp.ne.s32.totalorder %s70, %s71
      %p85 = scmp.eq.s32.totalorder %s23, 3
      %p86 = por %p84, %p85
      %p88 = scmp.ne.s32.totalorder %s71, %s87
      %p89 = scmp.eq.s32.totalorder %s23, 0
      %p90 = por %p88, %p89
      %s92 = sadd.s32 %s91, 1
      %p95 = scmp.eq.s32.totalorder %s17, 3
      %p96 = scmp.ne.s32.totalorder %s91, %s93
      %p97 = scmp.eq.s32.totalorder %s17, 0
      %p98 = por %p96, %p97
      %p99 = scmp.ne.s32.totalorder %s91, %s93
      %p100 = scmp.eq.s32.totalorder %s22, 3
      %p101 = por %p99, %p100
      %p102 = scmp.ne.s32.totalorder %s93, %s94
      %p103 = scmp.eq.s32.totalorder %s22, 0
      %p104 = por %p102, %p103
      %p105 = scmp.ne.s32.totalorder %s93, %s94
      %p106 = scmp.eq.s32.totalorder %s23, 3
      %p107 = por %p105, %p106
      %p109 = scmp.ne.s32.totalorder %s94, %s108
      %p110 = scmp.eq.s32.totalorder %s23, 0
      %p111 = por %p109, %p110
      %s113 = sadd.s32 %s112, 1
      %p116 = scmp.eq.s32.totalorder %s17, 3
      %p117 = scmp.ne.s32.totalorder %s112, %s114
      %p118 = scmp.eq.s32.totalorder %s17, 0
      %p119 = por %p117, %p118
      %p120 = scmp.ne.s32.totalorder %s112, %s114
      %p121 = scmp.eq.s32.totalorder %s22, 3
      %p122 = por %p120, %p121
      %p123 = scmp.ne.s32.totalorder %s114, %s115
      %p124 = scmp.eq.s32.totalorder %s22, 0
      %p125 = por %p123, %p124
      %p126 = scmp.ne.s32.totalorder %s114, %s115
      %p127 = scmp.eq.s32.totalorder %s23, 3
      %p128 = por %p126, %p127
      %p130 = scmp.ne.s32.totalorder %s115, %s129
      %p131 = scmp.eq.s32.totalorder %s23, 0
      %p132 = por %p130, %p131
      %s134 = sadd.s32 %s133, 1
      %p137 = scmp.eq.s32.totalorder %s17, 3
      %p138 = scmp.ne.s32.totalorder %s133, %s135
      %p139 = scmp.eq.s32.totalorder %s17, 0
      %p140 = por %p138, %p139
      %p141 = scmp.ne.s32.totalorder %s133, %s135
      %p142 = scmp.eq.s32.totalorder %s22, 3
      %p143 = por %p141, %p142
      %p144 = scmp.ne.s32.totalorder %s135, %s136
      %p145 = scmp.eq.s32.totalorder %s22, 0
      %p146 = por %p144, %p145
      %p147 = scmp.ne.s32.totalorder %s135, %s136
      %p148 = scmp.eq.s32.totalorder %s23, 3
      %p149 = por %p147, %p148
      %p151 = scmp.ne.s32.totalorder %s136, %s150
      %p152 = scmp.eq.s32.totalorder %s23, 0
      %p153 = por %p151, %p152
      %s155 = sadd.s32 %s154, 1
      %p158 = scmp.eq.s32.totalorder %s17, 3
      %p159 = scmp.ne.s32.totalorder %s154, %s156
      %p160 = scmp.eq.s32.totalorder %s17, 0
      %p161 = por %p159, %p160
      %p162 = scmp.ne.s32.totalorder %s154, %s156
      %p163 = scmp.eq.s32.totalorder %s22, 3
      %p164 = por %p162, %p163
      %p165 = scmp.ne.s32.totalorder %s156, %s157
      %p166 = scmp.eq.s32.totalorder %s22, 0
      %p167 = por %p165, %p166
      %p168 = scmp.ne.s32.totalorder %s156, %s157
      %p169 = scmp.eq.s32.totalorder %s23, 3
      %p170 = por %p168, %p169
      %p172 = scmp.ne.s32.totalorder %s157, %s171
      %p173 = scmp.eq.s32.totalorder %s23, 0
      %p174 = por %p172, %p173
      %s176 = sadd.s32 %s175, 1
      %p179 = scmp.eq.s32.totalorder %s17, 3
      %p180 = scmp.ne.s32.totalorder %s175, %s177
      %p181 = scmp.eq.s32.totalorder %s17, 0
      %p182 = por %p180, %p181
      %p183 = scmp.ne.s32.totalorder %s175, %s177
      %p184 = scmp.eq.s32.totalorder %s22, 3
      %p185 = por %p183, %p184
      %p186 = scmp.ne.s32.totalorder %s177, %s178
      %p187 = scmp.eq.s32.totalorder %s22, 0
      %p188 = por %p186, %p187
      %p189 = scmp.ne.s32.totalorder %s177, %s178
      %p190 = scmp.eq.s32.totalorder %s23, 3
      %p191 = por %p189, %p190
      %p193 = scmp.ne.s32.totalorder %s178, %s192
      %p194 = scmp.eq.s32.totalorder %s23, 0
      %p195 = por %p193, %p194
      %s197 = sadd.s32 %s196, 1
      %p200 = scmp.eq.s32.totalorder %s17, 3
      %p201 = scmp.ne.s32.totalorder %s196, %s198
      %p202 = scmp.eq.s32.totalorder %s17, 0
      %p203 = por %p201, %p202
      %p204 = scmp.ne.s32.totalorder %s196, %s198
      %p205 = scmp.eq.s32.totalorder %s22, 3
      %p206 = por %p204, %p205
      %p207 = scmp.ne.s32.totalorder %s198, %s199
      %p208 = scmp.eq.s32.totalorder %s22, 0
      %p209 = por %p207, %p208
      %p210 = scmp.ne.s32.totalorder %s198, %s199
      %p211 = scmp.eq.s32.totalorder %s23, 3
      %p212 = por %p210, %p211
      %p214 = scmp.ne.s32.totalorder %s199, %s213
      %p215 = scmp.eq.s32.totalorder %s23, 0
      %p216 = por %p214, %p215
      %s217 = ssub.s32 %s24, %s36
      %s218 = ssub.s32 %s25, %s32
      %s219 = sor.u32 %s217, %s218
      %p220 = scmp.eq.s32.totalorder %s219, 0
      %s222 = sadd.s32 %s221, 1
      %s223 = scalar_select %p220, %s221, %s222
      %p226 = pneg %p220
      %p227 = scmp.eq.s32.totalorder %s17, 3
      %p228 = por %p226, %p227
      %p229 = scmp.ne.s32.totalorder %s221, %s224
      %p230 = scmp.eq.s32.totalorder %s17, 0
      %p231 = por %p229, %p230
      %p232 = scmp.ne.s32.totalorder %s221, %s224
      %p233 = scmp.eq.s32.totalorder %s22, 3
      %p234 = por %p232, %p233
      %p235 = scmp.ne.s32.totalorder %s224, %s225
      %p236 = scmp.eq.s32.totalorder %s22, 0
      %p237 = por %p235, %p236
      %p238 = scmp.ne.s32.totalorder %s224, %s225
      %p239 = scmp.eq.s32.totalorder %s23, 3
      %p240 = por %p238, %p239
      %p242 = scmp.ne.s32.totalorder %s225, %s241
      %p243 = scmp.eq.s32.totalorder %s23, 0
      %p244 = por %p242, %p243
      %p245 = scmp.le.s32.totalorder 1, %s17
      %p246 = scmp.lt.s32.totalorder %s17, 5
      %p247 = pnand %p245, %p246
      %p248 = pneg %p247
      // Predicated region
      $region9: #{tpu_custom_call.1} parent=5 // pred_check
        _
      $region10: #{tpu_custom_call.1} parent=5 // pred_check_branch
        %250 = sbr.rel (%p247) target = $region12
      $region11: #{tpu_custom_call.1} parent=5 // pred_region
        %s251 = ssub.s32 %s17, 1
        // Predicated region
        $region13: #{tpu_custom_call.1} parent=11 // pred_check
          %p252 = pneg %p104
        $region14: #{tpu_custom_call.1} parent=11 // pred_check_branch
          %254 = sbr.rel (%p252) target = $region16
        $region15: #{tpu_custom_call.1} parent=11 // pred_region
          _
        $region16: #{tpu_custom_call.1} parent=11 // pred_fallthru
          _
        // Predicated region
        $region17: #{tpu_custom_call.1} parent=11 // pred_check
          %p255 = pneg %p125
        $region18: #{tpu_custom_call.1} parent=11 // pred_check_branch
          %257 = sbr.rel (%p255) target = $region20
        $region19: #{tpu_custom_call.1} parent=11 // pred_region
          _
        $region20: #{tpu_custom_call.1} parent=11 // pred_fallthru
          _
        // Predicated region
        $region21: #{tpu_custom_call.1} parent=11 // pred_check
          %p258 = pneg %p146
        $region22: #{tpu_custom_call.1} parent=11 // pred_check_branch
          %260 = sbr.rel (%p258) target = $region24
        $region23: #{tpu_custom_call.1} parent=11 // pred_region
          _
        $region24: #{tpu_custom_call.1} parent=11 // pred_fallthru
          _
        // Predicated region
        $region25: #{tpu_custom_call.1} parent=11 // pred_check
          %p261 = pneg %p167
        $region26: #{tpu_custom_call.1} parent=11 // pred_check_branch
          %263 = sbr.rel (%p261) target = $region28
        $region27: #{tpu_custom_call.1} parent=11 // pred_region
          _
        $region28: #{tpu_custom_call.1} parent=11 // pred_fallthru
          _
        // Predicated region
        $region29: #{tpu_custom_call.1} parent=11 // pred_check
          %p264 = pneg %p188
        $region30: #{tpu_custom_call.1} parent=11 // pred_check_branch
          %266 = sbr.rel (%p264) target = $region32
        $region31: #{tpu_custom_call.1} parent=11 // pred_region
          _
        $region32: #{tpu_custom_call.1} parent=11 // pred_fallthru
          _
        // Predicated region
        $region33: #{tpu_custom_call.1} parent=11 // pred_check
          %p267 = pneg %p209
        $region34: #{tpu_custom_call.1} parent=11 // pred_check_branch
          %269 = sbr.rel (%p267) target = $region36
        $region35: #{tpu_custom_call.1} parent=11 // pred_region
          _
        $region36: #{tpu_custom_call.1} parent=11 // pred_fallthru
          _
      $region12: #{tpu_custom_call.1} parent=5 // pred_fallthru
        _
      %p270 = scmp.lt.s32.totalorder %s17, 4
      // Predicated region
      $region37: #{tpu_custom_call.1} parent=5 // pred_check
        %p271 = pneg %p270
      $region38: #{tpu_custom_call.1} parent=5 // pred_check_branch
        %273 = sbr.rel (%p271) target = $region40
      $region39: #{tpu_custom_call.1} parent=5 // pred_region
        // Predicated region
        $region41: #{tpu_custom_call.1} parent=39 // pred_check
          %p274 = pneg %p51
        $region42: #{tpu_custom_call.1} parent=39 // pred_check_branch
          %276 = sbr.rel (%p274) target = $region44
        $region43: #{tpu_custom_call.1} parent=39 // pred_region
          %p277 = scmp.lt.s32.totalorder %s24, 1
          %s278 = scalar_select %p277, %s24, 1
          %p279 = scmp.lt.s32.totalorder %s25, 1
          %s280 = scalar_select %p279, %s25, 1
          %s281 = smul.addr %s280, 30
          %s282 = smul.addr %s278, 60
          %s283 = sadd.s32 %s281, %s282
          %s284 = smul.addr %s283, 8
          %s285 = scalar_lea.vmem %s0, %s284
        $region44: #{tpu_custom_call.1} parent=39 // pred_fallthru
          _
        // Predicated region
        $region45: #{tpu_custom_call.1} parent=39 // pred_check
          %p286 = pneg %p77
        $region46: #{tpu_custom_call.1} parent=39 // pred_check_branch
          %288 = sbr.rel (%p286) target = $region48
        $region47: #{tpu_custom_call.1} parent=39 // pred_region
          %p289 = scmp.lt.s32.totalorder %s25, 1
          %s290 = scalar_select %p289, %s25, 1
          %s291 = smul.addr %s290, 30
          %s292 = smul.addr %s291, 8
          %s293 = scalar_lea.vmem %s1, %s292
        $region48: #{tpu_custom_call.1} parent=39 // pred_fallthru
          _
      $region40: #{tpu_custom_call.1} parent=5 // pred_fallthru
        _
      %p294 = scmp.le.s32.totalorder 1, %s17
      %p295 = scmp.lt.s32.totalorder %s17, 5
      %p296 = pnand %p294, %p295
      %p297 = pneg %p296
      // Predicated region
      $region49: #{tpu_custom_call.1} parent=5 // pred_check
        _
      $region50: #{tpu_custom_call.1} parent=5 // pred_check_branch
        %299 = sbr.rel (%p296) target = $region52
      $region51: #{tpu_custom_call.1} parent=5 // pred_region
        %s300 = ssub.s32 %s17, 1
        %p301 = scmp.lt.s32.totalorder %s26, 1
        %s302 = scalar_select %p301, %s26, 1
        %p303 = scmp.lt.s32.totalorder %s27, 1
        %s304 = scalar_select %p303, %s27, 1
        %s305 = smul.addr %s304, 30
        %s306 = smul.addr %s302, 60
        %s307 = sadd.s32 %s305, %s306
        %s308 = smul.addr %s307, 8
        %s309 = scalar_lea.vmem %s0, %s308
        %p310 = pneg %p57
        %p311 = pneg %p54
        %p312 = scmp.lt.s32.totalorder %s27, 1
        %s313 = scalar_select %p312, %s27, 1
        %s314 = smul.addr %s313, 30
        %s315 = smul.addr %s314, 8
        %s316 = scalar_lea.vmem %s1, %s315
        %p317 = pneg %p83
        %p318 = pneg %p80
        %p319 = pneg %p104
        %p320 = pneg %p101
        %p321 = pneg %p125
        %p322 = pneg %p122
        %p323 = pneg %p146
        %p324 = pneg %p143
        %p325 = pneg %p167
        %p326 = pneg %p164
        %p327 = pneg %p188
        %p328 = pneg %p185
        %p329 = pneg %p209
        %p330 = pneg %p206
        %p331 = pneg %p237
        %p332 = pneg %p234
        %s333 = sand.u32 %s224, 1
        %s334 = scalar_lea.sflag [#allocation4], %s333
        %s335 = sand.u32 %s224, 1
        %s336 = smul.addr %s335, 128
        %s337 = scalar_lea.vmem [#allocation3], %s336
        %p338 = scmp.lt.s32.totalorder %s26, 1
        %s339 = scalar_select %p338, %s26, 1
        %p340 = scmp.lt.s32.totalorder %s27, 1
        %s341 = scalar_select %p340, %s27, 1
        %s342 = smul.addr %s341, 30
        %s343 = smul.addr %s339, 60
        %s344 = sadd.s32 %s342, %s343
        %s345 = smul.addr %s344, 8
        %s346 = scalar_lea.vmem %s0, %s345
        %p347 = scmp.lt.s32.totalorder %s27, 1
        %s348 = scalar_select %p347, %s27, 1
        %s349 = smul.addr %s348, 30
        %s350 = smul.addr %s349, 8
        %s351 = scalar_lea.vmem %s1, %s350
        %s352 = smul.u32 8, %s27
        %353 = vst [vmem:[#allocation2 + $0xf0] sm:$0xff] 0.0
        %v354 = vlaneseq
        %v355 = vand.u32 %v354, 127
        %vm356 = vcmp.lt.s32.totalorder %v355, 32
        %v357 = vld [vmem:[%s2] sm:$0xff]
        %v358 = vld [vmem:[%s2 + $0x8] sm:$0xff]
        %v359 = vld [vmem:[%s2 + $0x10] sm:$0xff]
        %v360 = vld [vmem:[%s2 + $0x18] sm:$0xff]
        %v361 = vld [vmem:[%s2 + $0x20] sm:$0xff]
        %v362 = vld [vmem:[%s3] sm:$0x1]
        %v363 = vld [vmem:[%s4] sm:$0x1]
        %v364 = vld [vmem:[%s5] sm:$0x1]
        loop: start=0, step=1, limit=5
        $region53: #{tpu_custom_call.1} parent=51 // loop_pre_header
          _
        $region54: #{tpu_custom_call.1} parent=51 // loop_header
          %s366 = sphi 0, %s370
          %p367 = scmp.ge.s32.totalorder %s366, 5
        $region55: #{tpu_custom_call.1} parent=51 // loop_header_branch
          %369 = sbr.rel (%p367) target = $region59
        $region56: #{tpu_custom_call.1} parent=51 // loop_body
          %s371 = smul.u32 %s366, 48
          %s372 = scalar_lea.vmem %s346, %s371
          %v373 = vld [vmem:[%s372] sm:$0xff]
          %v374 = vld [vmem:[%s372 + $0x8] sm:$0xff]
          %v375 = vld [vmem:[%s372 + $0x10] sm:$0xff]
          %v376 = vld [vmem:[%s372 + $0x18] sm:$0xff]
          %v377 = vld [vmem:[%s372 + $0x20] sm:$0xff]
          %v378 = vld [vmem:[%s372 + $0x28] sm:$0xff]
          %v380 = vperm.slane %v362, 0
          %vm382 = vcmask 326656
          %v384 = vsel %vm382, %v373, 0
          %v387 = vsel %vm382, %v374, 0
          %v390 = vsel %vm382, %v375, 0
          %v393 = vsel %vm382, %v376, 0
          %v396 = vsel %vm382, %v377, 0
          %v399 = vsel %vm382, %v378, 0
          %401 = vmatpush.msra.mxu0 0.0
          %402 = vmatpush.msra.mxu0 0.0
          %403 = vmatpush.msra.mxu0 0.0
          %404 = vmatpush.msra.mxu0 0.0
          %405 = vmatpush.msra.mxu0 0.0
          %406 = vmatpush.msra.mxu0 0.0
          %407 = vmatpush.msra.mxu0 0.0
          %408 = vmatpush.msra.mxu0 0.0
          %409 = vmatpush.msra.mxu0 0.0
          %410 = vmatpush.msra.mxu0 0.0
          %411 = vmatpush.msra.mxu0 0.0
          %412 = vmatpush.msra.mxu0 %v361
          %413 = vmatpush.msra.mxu0 %v360
          %414 = vmatpush.msra.mxu0 %v359
          %415 = vmatpush.msra.mxu0 %v358
          %416 = vmatpush.msra.mxu0 %v357
          %417 = vmatmul.f32.gmra.mxu0 %v384
          %v418 = vpop.f32.mrf.mxu0
          %v419 = vadd.f32 %v380, %v418
          %420 = vmatmul.f32.gmra.mxu0 %v387
          %v421 = vpop.f32.mrf.mxu0
          %v422 = vadd.f32 %v380, %v421
          %423 = vmatmul.f32.gmra.mxu0 %v390
          %v424 = vpop.f32.mrf.mxu0
          %v425 = vadd.f32 %v380, %v424
          %426 = vmatmul.f32.gmra.mxu0 %v393
          %v427 = vpop.f32.mrf.mxu0
          %v428 = vadd.f32 %v380, %v427
          %429 = vmatmul.f32.gmra.mxu0 %v396
          %v430 = vpop.f32.mrf.mxu0
          %v431 = vadd.f32 %v380, %v430
          %432 = vmatmul.f32.gmra.mxu0 %v399
          %v433 = vpop.f32.mrf.mxu0
          %v434 = vadd.f32 %v380, %v433
          %435 = vdwg.mxu0
          %v436 = vsel %vm356, 1, 0
          %vm437 = vcmp.eq.s32.totalorder %v436, 1
          %v438 = vsel %vm437, %v419, 0.0
          %v439 = vsel %vm437, %v422, 0.0
          %v440 = vsel %vm437, %v425, 0.0
          %v441 = vsel %vm437, %v428, 0.0
          %v442 = vsel %vm437, %v431, 0.0
          %v443 = vsel %vm437, %v434, 0.0
          %444 = vadd.xlane.f32.xlu0 %v438
          %v445 = vpop.xlane.xlu0 %444
          %446 = vadd.xlane.f32.xlu0 %v439
          %v447 = vpop.xlane.xlu0 %446
          %448 = vadd.xlane.f32.xlu0 %v440
          %v449 = vpop.xlane.xlu0 %448
          %450 = vadd.xlane.f32.xlu0 %v441
          %v451 = vpop.xlane.xlu0 %450
          %452 = vadd.xlane.f32.xlu0 %v442
          %v453 = vpop.xlane.xlu0 %452
          %454 = vadd.xlane.f32.xlu0 %v443
          %v455 = vpop.xlane.xlu0 %454
          %v456 = vmul.f32 %v445, 0.03125
          %v457 = vmul.f32 %v447, 0.03125
          %v458 = vmul.f32 %v449, 0.03125
          %v459 = vmul.f32 %v451, 0.03125
          %v460 = vmul.f32 %v453, 0.03125
          %v461 = vmul.f32 %v455, 0.03125
          %v462 = vsub.f32 %v419, %v456
          %v463 = vsub.f32 %v422, %v457
          %v464 = vsub.f32 %v425, %v458
          %v465 = vsub.f32 %v428, %v459
          %v466 = vsub.f32 %v431, %v460
          %v467 = vsub.f32 %v434, %v461
          %v468 = vsel %vm437, %v462, 0.0
          %v469 = vsel %vm437, %v463, 0.0
          %v470 = vsel %vm437, %v464, 0.0
          %v471 = vsel %vm437, %v465, 0.0
          %v472 = vsel %vm437, %v466, 0.0
          %v473 = vsel %vm437, %v467, 0.0
          %v474 = vmul.f32 %v468, %v468
          %v475 = vmul.f32 %v469, %v469
          %v476 = vmul.f32 %v470, %v470
          %v477 = vmul.f32 %v471, %v471
          %v478 = vmul.f32 %v472, %v472
          %v479 = vmul.f32 %v473, %v473
          %480 = vadd.xlane.f32.xlu0 %v474
          %v481 = vpop.xlane.xlu0 %480
          %482 = vadd.xlane.f32.xlu0 %v475
          %v483 = vpop.xlane.xlu0 %482
          %484 = vadd.xlane.f32.xlu0 %v476
          %v485 = vpop.xlane.xlu0 %484
          %486 = vadd.xlane.f32.xlu0 %v477
          %v487 = vpop.xlane.xlu0 %486
          %488 = vadd.xlane.f32.xlu0 %v478
          %v489 = vpop.xlane.xlu0 %488
          %490 = vadd.xlane.f32.xlu0 %v479
          %v491 = vpop.xlane.xlu0 %490
          %v492 = vmul.f32 %v481, 0.03125
          %v493 = vmul.f32 %v483, 0.03125
          %v494 = vmul.f32 %v485, 0.03125
          %v495 = vmul.f32 %v487, 0.03125
          %v496 = vmul.f32 %v489, 0.03125
          %v497 = vmul.f32 %v491, 0.03125
          %v498 = vadd.f32 %v492, 1e-06
          %v499 = vadd.f32 %v493, 1e-06
          %v500 = vadd.f32 %v494, 1e-06
          %v501 = vadd.f32 %v495, 1e-06
          %v502 = vadd.f32 %v496, 1e-06
          %v503 = vadd.f32 %v497, 1e-06
          %v504 = vrsqrt.pop %v498
          %v505 = vmul.f32 %v504, %v498
          %v506 = vmul.f32 %v505, %v504
          %v507 = vmul.f32 0.5, %v506
          %v508 = vsub.f32 1.5, %v507
          %v509 = vmul.f32 %v504, %v508
          %vm510 = vweird.f32 %v498
          %vm511 = vweird.f32 %v504
          %vm512 = vmor %vm510, %vm511
          %v513 = vsel %vm512, %v504, %v509
          %v514 = vrsqrt.pop %v499
          %v515 = vmul.f32 %v514, %v499
          %v516 = vmul.f32 %v515, %v514
          %v517 = vmul.f32 0.5, %v516
          %v518 = vsub.f32 1.5, %v517
          %v519 = vmul.f32 %v514, %v518
          %vm520 = vweird.f32 %v499
          %vm521 = vweird.f32 %v514
          %vm522 = vmor %vm520, %vm521
          %v523 = vsel %vm522, %v514, %v519
          %v524 = vrsqrt.pop %v500
          %v525 = vmul.f32 %v524, %v500
          %v526 = vmul.f32 %v525, %v524
          %v527 = vmul.f32 0.5, %v526
          %v528 = vsub.f32 1.5, %v527
          %v529 = vmul.f32 %v524, %v528
          %vm530 = vweird.f32 %v500
          %vm531 = vweird.f32 %v524
          %vm532 = vmor %vm530, %vm531
          %v533 = vsel %vm532, %v524, %v529
          %v534 = vrsqrt.pop %v501
          %v535 = vmul.f32 %v534, %v501
          %v536 = vmul.f32 %v535, %v534
          %v537 = vmul.f32 0.5, %v536
          %v538 = vsub.f32 1.5, %v537
          %v539 = vmul.f32 %v534, %v538
          %vm540 = vweird.f32 %v501
          %vm541 = vweird.f32 %v534
          %vm542 = vmor %vm540, %vm541
          %v543 = vsel %vm542, %v534, %v539
          %v544 = vrsqrt.pop %v502
          %v545 = vmul.f32 %v544, %v502
          %v546 = vmul.f32 %v545, %v544
          %v547 = vmul.f32 0.5, %v546
          %v548 = vsub.f32 1.5, %v547
          %v549 = vmul.f32 %v544, %v548
          %vm550 = vweird.f32 %v502
          %vm551 = vweird.f32 %v544
          %vm552 = vmor %vm550, %vm551
          %v553 = vsel %vm552, %v544, %v549
          %v554 = vrsqrt.pop %v503
          %v555 = vmul.f32 %v554, %v503
          %v556 = vmul.f32 %v555, %v554
          %v557 = vmul.f32 0.5, %v556
          %v558 = vsub.f32 1.5, %v557
          %v559 = vmul.f32 %v554, %v558
          %vm560 = vweird.f32 %v503
          %vm561 = vweird.f32 %v554
          %vm562 = vmor %vm560, %vm561
          %v563 = vsel %vm562, %v554, %v559
          %v564 = vmul.f32 %v468, %v513
          %v565 = vmul.f32 %v469, %v523
          %v566 = vmul.f32 %v470, %v533
          %v567 = vmul.f32 %v471, %v543
          %v568 = vmul.f32 %v472, %v553
          %v569 = vmul.f32 %v473, %v563
          %v571 = vperm.slane %v363, 0
          %v573 = vmul.f32 %v564, %v571
          %v574 = vmul.f32 %v565, %v571
          %v575 = vmul.f32 %v566, %v571
          %v576 = vmul.f32 %v567, %v571
          %v577 = vmul.f32 %v568, %v571
          %v578 = vmul.f32 %v569, %v571
          %v580 = vperm.slane %v364, 0
          %v582 = vadd.f32 %v573, %v580
          %v583 = vadd.f32 %v574, %v580
          %v584 = vadd.f32 %v575, %v580
          %v585 = vadd.f32 %v576, %v580
          %v586 = vadd.f32 %v577, %v580
          %v587 = vadd.f32 %v578, %v580
          %v588 = vmul.f32 %v582, 0.5
          %v589 = vmul.f32 %v583, 0.5
          %v590 = vmul.f32 %v584, 0.5
          %v591 = vmul.f32 %v585, 0.5
          %v592 = vmul.f32 %v586, 0.5
          %v593 = vmul.f32 %v587, 0.5
          %v594 = vmul.f32 %v582, %v582
          %v595 = vmul.f32 %v583, %v583
          %v596 = vmul.f32 %v584, %v584
          %v597 = vmul.f32 %v585, %v585
          %v598 = vmul.f32 %v586, %v586
          %v599 = vmul.f32 %v587, %v587
          %v600 = vmul.f32 %v594, %v582
          %v601 = vmul.f32 %v595, %v583
          %v602 = vmul.f32 %v596, %v584
          %v603 = vmul.f32 %v597, %v585
          %v604 = vmul.f32 %v598, %v586
          %v605 = vmul.f32 %v599, %v587
          %v606 = vmul.f32 %v600, 0.044715
          %v607 = vmul.f32 %v601, 0.044715
          %v608 = vmul.f32 %v602, 0.044715
          %v609 = vmul.f32 %v603, 0.044715
          %v610 = vmul.f32 %v604, 0.044715
          %v611 = vmul.f32 %v605, 0.044715
          %v612 = vadd.f32 %v582, %v606
          %v613 = vadd.f32 %v583, %v607
          %v614 = vadd.f32 %v584, %v608
          %v615 = vadd.f32 %v585, %v609
          %v616 = vadd.f32 %v586, %v610
          %v617 = vadd.f32 %v587, %v611
          %v618 = vmul.f32 %v612, 0.7978846
          %v619 = vmul.f32 %v613, 0.7978846
          %v620 = vmul.f32 %v614, 0.7978846
          %v621 = vmul.f32 %v615, 0.7978846
          %v622 = vmul.f32 %v616, 0.7978846
          %v623 = vmul.f32 %v617, 0.7978846
          %v624 = vtanh.pop %v618
          %v625 = vtanh.pop %v619
          %v626 = vtanh.pop %v620
          %v627 = vtanh.pop %v621
          %v628 = vtanh.pop %v622
          %v629 = vtanh.pop %v623
          %v630 = vadd.f32 %v624, 1.0
          %v631 = vadd.f32 %v625, 1.0
          %v632 = vadd.f32 %v626, 1.0
          %v633 = vadd.f32 %v627, 1.0
          %v634 = vadd.f32 %v628, 1.0
          %v635 = vadd.f32 %v629, 1.0
          %v636 = vmul.f32 %v588, %v630
          %v637 = vmul.f32 %v589, %v631
          %v638 = vmul.f32 %v590, %v632
          %v639 = vmul.f32 %v591, %v633
          %v640 = vmul.f32 %v592, %v634
          %v641 = vmul.f32 %v593, %v635
          %s642 = scalar_lea.vmem %s351, %s371
          %v643 = vld [vmem:[%s642] sm:$0xff]
          %v644 = vld [vmem:[%s642 + $0x8] sm:$0xff]
          %v645 = vld [vmem:[%s642 + $0x10] sm:$0xff]
          %v646 = vld [vmem:[%s642 + $0x18] sm:$0xff]
          %v647 = vld [vmem:[%s642 + $0x20] sm:$0xff]
          %v648 = vld [vmem:[%s642 + $0x28] sm:$0xff]
          %650 = vset.pattern.permute.xlu0 0
          %651 = vperm.xlu0 %650, %v643
          %v652 = vpop.permute.xlu0 %651
          %655 = vset.pattern.permute.xlu0 0
          %656 = vperm.xlu0 %655, %v644
          %v657 = vpop.permute.xlu0 %656
          %660 = vset.pattern.permute.xlu0 0
          %661 = vperm.xlu0 %660, %v645
          %v662 = vpop.permute.xlu0 %661
          %665 = vset.pattern.permute.xlu0 0
          %666 = vperm.xlu0 %665, %v646
          %v667 = vpop.permute.xlu0 %666
          %670 = vset.pattern.permute.xlu0 0
          %671 = vperm.xlu0 %670, %v647
          %v672 = vpop.permute.xlu0 %671
          %675 = vset.pattern.permute.xlu0 0
          %676 = vperm.xlu0 %675, %v648
          %v677 = vpop.permute.xlu0 %676
          %v679 = vmul.f32 %v636, %v652
          %v680 = vmul.f32 %v637, %v657
          %v681 = vmul.f32 %v638, %v662
          %v682 = vmul.f32 %v639, %v667
          %v683 = vmul.f32 %v640, %v672
          %v684 = vmul.f32 %v641, %v677
          %s685 = scalar_lea.vmem [#allocation2], %s371
          %686 = vst [vmem:[%s685] sm:$0xff] %v679
          %687 = vst [vmem:[%s685 + $0x8] sm:$0xff] %v680
          %688 = vst [vmem:[%s685 + $0x10] sm:$0xff] %v681
          %689 = vst [vmem:[%s685 + $0x18] sm:$0xff] %v682
          %690 = vst [vmem:[%s685 + $0x20] sm:$0xff] %v683
          %691 = vst [vmem:[%s685 + $0x28] sm:$0xff] %v684
        $region57: #{tpu_custom_call.1} parent=51 // loop_footer
          %s370 = sadd.s32 1, %s366
        $region58: #{tpu_custom_call.1} parent=51 // loop_footer_branch
          %365 = sbr.rel target = $region54
        $region59: #{tpu_custom_call.1} parent=51 // loop_exit
          _
        %v692 = vld [vmem:[%s7] sm:$0x1]
        loop: start=0, step=1, limit=4
        $region60: #{tpu_custom_call.1} parent=51 // loop_pre_header
          _
        $region61: #{tpu_custom_call.1} parent=51 // loop_header
          %s694 = sphi 0, %s698
          %p695 = scmp.ge.s32.totalorder %s694, 4
        $region62: #{tpu_custom_call.1} parent=51 // loop_header_branch
          %697 = sbr.rel (%p695) target = $region66
        $region63: #{tpu_custom_call.1} parent=51 // loop_body
          %s699 = smul.u32 %s694, 48
          %s700 = scalar_lea.vmem [#allocation2], %s699
          %v701 = vld [vmem:[%s700] sm:$0xff]
          %v702 = vld [vmem:[%s700 + $0x8] sm:$0xff]
          %v703 = vld [vmem:[%s700 + $0x10] sm:$0xff]
          %v704 = vld [vmem:[%s700 + $0x18] sm:$0xff]
          %v705 = vld [vmem:[%s700 + $0x20] sm:$0xff]
          %v706 = vld [vmem:[%s700 + $0x28] sm:$0xff]
          %v707 = vld [vmem:[%s6] sm:$0xff]
          %v708 = vld [vmem:[%s6 + $0x8] sm:$0xff]
          %v709 = vld [vmem:[%s6 + $0x10] sm:$0xff]
          %v710 = vld [vmem:[%s6 + $0x18] sm:$0xff]
          %v711 = vld [vmem:[%s6 + $0x20] sm:$0xff]
          %v712 = vld [vmem:[%s6 + $0x28] sm:$0xff]
          %v713 = vld [vmem:[%s6 + $0x30] sm:$0xff]
          %v714 = vld [vmem:[%s6 + $0x38] sm:$0xff]
          %v715 = vld [vmem:[%s6 + $0x40] sm:$0xff]
          %v716 = vld [vmem:[%s6 + $0x48] sm:$0xff]
          %v717 = vld [vmem:[%s6 + $0x50] sm:$0xff]
          %v718 = vld [vmem:[%s6 + $0x58] sm:$0xff]
          %v719 = vld [vmem:[%s6 + $0x60] sm:$0xff]
          %v720 = vld [vmem:[%s6 + $0x68] sm:$0xff]
          %v721 = vld [vmem:[%s6 + $0x70] sm:$0xff]
          %v722 = vld [vmem:[%s6 + $0x78] sm:$0xff]
          %s723 = sadd.s32 %s699, 1
          %s724 = scalar_lea.vmem [#allocation2], %s723
          %v725 = vld [vmem:[%s724] sm:$0xff]
          %v726 = vld [vmem:[%s724 + $0x8] sm:$0xff]
          %v727 = vld [vmem:[%s724 + $0x10] sm:$0xff]
          %v728 = vld [vmem:[%s724 + $0x18] sm:$0xff]
          %v729 = vld [vmem:[%s724 + $0x20] sm:$0xff]
          %v730 = vld [vmem:[%s724 + $0x28] sm:$0xff]
          %s731 = scalar_lea.vmem %s6, 128
          %v732 = vld [vmem:[%s731] sm:$0xff]
          %v733 = vld [vmem:[%s731 + $0x8] sm:$0xff]
          %v734 = vld [vmem:[%s731 + $0x10] sm:$0xff]
          %v735 = vld [vmem:[%s731 + $0x18] sm:$0xff]
          %v736 = vld [vmem:[%s731 + $0x20] sm:$0xff]
          %v737 = vld [vmem:[%s731 + $0x28] sm:$0xff]
          %v738 = vld [vmem:[%s731 + $0x30] sm:$0xff]
          %v739 = vld [vmem:[%s731 + $0x38] sm:$0xff]
          %v740 = vld [vmem:[%s731 + $0x40] sm:$0xff]
          %v741 = vld [vmem:[%s731 + $0x48] sm:$0xff]
          %v742 = vld [vmem:[%s731 + $0x50] sm:$0xff]
          %v743 = vld [vmem:[%s731 + $0x58] sm:$0xff]
          %v744 = vld [vmem:[%s731 + $0x60] sm:$0xff]
          %v745 = vld [vmem:[%s731 + $0x68] sm:$0xff]
          %v746 = vld [vmem:[%s731 + $0x70] sm:$0xff]
          %v747 = vld [vmem:[%s731 + $0x78] sm:$0xff]
          %748 = vmatpush.msra.mxu0 %v747
          %749 = vmatpush.msra.mxu0 %v746
          %750 = vmatpush.msra.mxu0 %v745
          %751 = vmatpush.msra.mxu0 %v744
          %752 = vmatpush.msra.mxu0 %v743
          %753 = vmatpush.msra.mxu0 %v742
          %754 = vmatpush.msra.mxu0 %v741
          %755 = vmatpush.msra.mxu0 %v740
          %756 = vmatpush.msra.mxu0 %v739
          %757 = vmatpush.msra.mxu0 %v738
          %758 = vmatpush.msra.mxu0 %v737
          %759 = vmatpush.msra.mxu0 %v736
          %760 = vmatpush.msra.mxu0 %v735
          %761 = vmatpush.msra.mxu0 %v734
          %762 = vmatpush.msra.mxu0 %v733
          %763 = vmatpush.msra.mxu0 %v732
          %764 = vmatmul.f32.gmra.mxu0 %v725
          %v765 = vpop.f32.mrf.mxu0
          %v766 = vadd.f32 0.0, %v765
          %767 = vmatmul.f32.gmra.mxu0 %v726
          %v768 = vpop.f32.mrf.mxu0
          %v769 = vadd.f32 0.0, %v768
          %770 = vmatmul.f32.gmra.mxu0 %v727
          %v771 = vpop.f32.mrf.mxu0
          %772 = vmatmul.f32.gmra.mxu0 %v728
          %v773 = vpop.f32.mrf.mxu0
          %v774 = vadd.f32 0.0, %v773
          %775 = vmatmul.f32.gmra.mxu0 %v729
          %v776 = vpop.f32.mrf.mxu0
          %v777 = vadd.f32 0.0, %v776
          %778 = vmatmul.f32.gmra.mxu0 %v730
          %v779 = vpop.f32.mrf.mxu0
          %780 = vdwg.mxu0
          %781 = vmatpush.msra.mxu0 %v722
          %782 = vmatpush.msra.mxu0 %v721
          %783 = vmatpush.msra.mxu0 %v720
          %784 = vmatpush.msra.mxu0 %v719
          %785 = vmatpush.msra.mxu0 %v718
          %786 = vmatpush.msra.mxu0 %v717
          %787 = vmatpush.msra.mxu0 %v716
          %788 = vmatpush.msra.mxu0 %v715
          %789 = vmatpush.msra.mxu0 %v714
          %790 = vmatpush.msra.mxu0 %v713
          %791 = vmatpush.msra.mxu0 %v712
          %792 = vmatpush.msra.mxu0 %v711
          %793 = vmatpush.msra.mxu0 %v710
          %794 = vmatpush.msra.mxu0 %v709
          %795 = vmatpush.msra.mxu0 %v708
          %796 = vmatpush.msra.mxu0 %v707
          %797 = vmatmul.f32.gmra.mxu0 %v701
          %v798 = vpop.f32.mrf.mxu0
          %v799 = vadd.f32 %v766, %v798
          %800 = vmatmul.f32.gmra.mxu0 %v702
          %v801 = vpop.f32.mrf.mxu0
          %v802 = vadd.f32 %v769, %v801
          %803 = vmatmul.f32.gmra.mxu0 %v703
          %v804 = vpop.f32.mrf.mxu0
          %805 = vmatmul.f32.gmra.mxu0 %v704
          %v806 = vpop.f32.mrf.mxu0
          %v807 = vadd.f32 %v774, %v806
          %808 = vmatmul.f32.gmra.mxu0 %v705
          %v809 = vpop.f32.mrf.mxu0
          %v810 = vadd.f32 %v777, %v809
          %811 = vmatmul.f32.gmra.mxu0 %v706
          %v812 = vpop.f32.mrf.mxu0
          %813 = vdwg.mxu0
          %s814 = sadd.s32 %s699, 2
          %s815 = scalar_lea.vmem [#allocation2], %s814
          %v816 = vld [vmem:[%s815] sm:$0xff]
          %v817 = vld [vmem:[%s815 + $0x8] sm:$0xff]
          %v818 = vld [vmem:[%s815 + $0x10] sm:$0xff]
          %v819 = vld [vmem:[%s815 + $0x18] sm:$0xff]
          %v820 = vld [vmem:[%s815 + $0x20] sm:$0xff]
          %v821 = vld [vmem:[%s815 + $0x28] sm:$0xff]
          %s822 = scalar_lea.vmem %s6, 256
          %v823 = vld [vmem:[%s822] sm:$0xff]
          %v824 = vld [vmem:[%s822 + $0x8] sm:$0xff]
          %v825 = vld [vmem:[%s822 + $0x10] sm:$0xff]
          %v826 = vld [vmem:[%s822 + $0x18] sm:$0xff]
          %v827 = vld [vmem:[%s822 + $0x20] sm:$0xff]
          %v828 = vld [vmem:[%s822 + $0x28] sm:$0xff]
          %v829 = vld [vmem:[%s822 + $0x30] sm:$0xff]
          %v830 = vld [vmem:[%s822 + $0x38] sm:$0xff]
          %v831 = vld [vmem:[%s822 + $0x40] sm:$0xff]
          %v832 = vld [vmem:[%s822 + $0x48] sm:$0xff]
          %v833 = vld [vmem:[%s822 + $0x50] sm:$0xff]
          %v834 = vld [vmem:[%s822 + $0x58] sm:$0xff]
          %v835 = vld [vmem:[%s822 + $0x60] sm:$0xff]
          %v836 = vld [vmem:[%s822 + $0x68] sm:$0xff]
          %v837 = vld [vmem:[%s822 + $0x70] sm:$0xff]
          %v838 = vld [vmem:[%s822 + $0x78] sm:$0xff]
          %839 = vmatpush.msra.mxu0 %v838
          %840 = vmatpush.msra.mxu0 %v837
          %841 = vmatpush.msra.mxu0 %v836
          %842 = vmatpush.msra.mxu0 %v835
          %843 = vmatpush.msra.mxu0 %v834
          %844 = vmatpush.msra.mxu0 %v833
          %845 = vmatpush.msra.mxu0 %v832
          %846 = vmatpush.msra.mxu0 %v831
          %847 = vmatpush.msra.mxu0 %v830
          %848 = vmatpush.msra.mxu0 %v829
          %849 = vmatpush.msra.mxu0 %v828
          %850 = vmatpush.msra.mxu0 %v827
          %851 = vmatpush.msra.mxu0 %v826
          %852 = vmatpush.msra.mxu0 %v825
          %853 = vmatpush.msra.mxu0 %v824
          %854 = vmatpush.msra.mxu0 %v823
          %855 = vmatmul.f32.gmra.mxu0 %v816
          %v856 = vpop.f32.mrf.mxu0
          %v857 = vadd.f32 0.0, %v856
          %858 = vmatmul.f32.gmra.mxu0 %v817
          %v859 = vpop.f32.mrf.mxu0
          %v860 = vadd.f32 0.0, %v859
          %861 = vmatmul.f32.gmra.mxu0 %v818
          %v862 = vpop.f32.mrf.mxu0
          %863 = vmatmul.f32.gmra.mxu0 %v819
          %v864 = vpop.f32.mrf.mxu0
          %v865 = vadd.f32 0.0, %v864
          %866 = vmatmul.f32.gmra.mxu0 %v820
          %v867 = vpop.f32.mrf.mxu0
          %v868 = vadd.f32 0.0, %v867
          %869 = vmatmul.f32.gmra.mxu0 %v821
          %v870 = vpop.f32.mrf.mxu0
          %871 = vdwg.mxu0
          %v872 = vadd.f32 %v799, %v857
          %v873 = vadd.f32 %v802, %v860
          %v874 = vadd.f32 %v807, %v865
          %v875 = vadd.f32 %v810, %v868
          %s876 = sadd.s32 %s699, 24
          %s877 = scalar_lea.vmem [#allocation2], %s876
          %v878 = vld [vmem:[%s877] sm:$0xff]
          %v879 = vld [vmem:[%s877 + $0x8] sm:$0xff]
          %v880 = vld [vmem:[%s877 + $0x10] sm:$0xff]
          %v881 = vld [vmem:[%s877 + $0x18] sm:$0xff]
          %v882 = vld [vmem:[%s877 + $0x20] sm:$0xff]
          %v883 = vld [vmem:[%s877 + $0x28] sm:$0xff]
          %s884 = scalar_lea.vmem %s6, 384
          %v885 = vld [vmem:[%s884] sm:$0xff]
          %v886 = vld [vmem:[%s884 + $0x8] sm:$0xff]
          %v887 = vld [vmem:[%s884 + $0x10] sm:$0xff]
          %v888 = vld [vmem:[%s884 + $0x18] sm:$0xff]
          %v889 = vld [vmem:[%s884 + $0x20] sm:$0xff]
          %v890 = vld [vmem:[%s884 + $0x28] sm:$0xff]
          %v891 = vld [vmem:[%s884 + $0x30] sm:$0xff]
          %v892 = vld [vmem:[%s884 + $0x38] sm:$0xff]
          %v893 = vld [vmem:[%s884 + $0x40] sm:$0xff]
          %v894 = vld [vmem:[%s884 + $0x48] sm:$0xff]
          %v895 = vld [vmem:[%s884 + $0x50] sm:$0xff]
          %v896 = vld [vmem:[%s884 + $0x58] sm:$0xff]
          %v897 = vld [vmem:[%s884 + $0x60] sm:$0xff]
          %v898 = vld [vmem:[%s884 + $0x68] sm:$0xff]
          %v899 = vld [vmem:[%s884 + $0x70] sm:$0xff]
          %v900 = vld [vmem:[%s884 + $0x78] sm:$0xff]
          %901 = vmatpush.msra.mxu0 %v900
          %902 = vmatpush.msra.mxu0 %v899
          %903 = vmatpush.msra.mxu0 %v898
          %904 = vmatpush.msra.mxu0 %v897
          %905 = vmatpush.msra.mxu0 %v896
          %906 = vmatpush.msra.mxu0 %v895
          %907 = vmatpush.msra.mxu0 %v894
          %908 = vmatpush.msra.mxu0 %v893
          %909 = vmatpush.msra.mxu0 %v892
          %910 = vmatpush.msra.mxu0 %v891
          %911 = vmatpush.msra.mxu0 %v890
          %912 = vmatpush.msra.mxu0 %v889
          %913 = vmatpush.msra.mxu0 %v888
          %914 = vmatpush.msra.mxu0 %v887
          %915 = vmatpush.msra.mxu0 %v886
          %916 = vmatpush.msra.mxu0 %v885
          %917 = vmatmul.f32.gmra.mxu0 %v878
          %v918 = vpop.f32.mrf.mxu0
          %v919 = vadd.f32 0.0, %v918
          %920 = vmatmul.f32.gmra.mxu0 %v879
          %v921 = vpop.f32.mrf.mxu0
          %v922 = vadd.f32 0.0, %v921
          %923 = vmatmul.f32.gmra.mxu0 %v880
          %v924 = vpop.f32.mrf.mxu0
          %925 = vmatmul.f32.gmra.mxu0 %v881
          %v926 = vpop.f32.mrf.mxu0
          %v927 = vadd.f32 0.0, %v926
          %928 = vmatmul.f32.gmra.mxu0 %v882
          %v929 = vpop.f32.mrf.mxu0
          %v930 = vadd.f32 0.0, %v929
          %931 = vmatmul.f32.gmra.mxu0 %v883
          %v932 = vpop.f32.mrf.mxu0
          %933 = vdwg.mxu0
          %v934 = vadd.f32 %v872, %v919
          %v935 = vadd.f32 %v873, %v922
          %v936 = vadd.f32 %v874, %v927
          %v937 = vadd.f32 %v875, %v930
          %s938 = sadd.s32 %s699, 25
          %s939 = scalar_lea.vmem [#allocation2], %s938
          %v940 = vld [vmem:[%s939] sm:$0xff]
          %v941 = vld [vmem:[%s939 + $0x8] sm:$0xff]
          %v942 = vld [vmem:[%s939 + $0x10] sm:$0xff]
          %v943 = vld [vmem:[%s939 + $0x18] sm:$0xff]
          %v944 = vld [vmem:[%s939 + $0x20] sm:$0xff]
          %v945 = vld [vmem:[%s939 + $0x28] sm:$0xff]
          %s946 = scalar_lea.vmem %s6, 512
          %v947 = vld [vmem:[%s946] sm:$0xff]
          %v948 = vld [vmem:[%s946 + $0x8] sm:$0xff]
          %v949 = vld [vmem:[%s946 + $0x10] sm:$0xff]
          %v950 = vld [vmem:[%s946 + $0x18] sm:$0xff]
          %v951 = vld [vmem:[%s946 + $0x20] sm:$0xff]
          %v952 = vld [vmem:[%s946 + $0x28] sm:$0xff]
          %v953 = vld [vmem:[%s946 + $0x30] sm:$0xff]
          %v954 = vld [vmem:[%s946 + $0x38] sm:$0xff]
          %v955 = vld [vmem:[%s946 + $0x40] sm:$0xff]
          %v956 = vld [vmem:[%s946 + $0x48] sm:$0xff]
          %v957 = vld [vmem:[%s946 + $0x50] sm:$0xff]
          %v958 = vld [vmem:[%s946 + $0x58] sm:$0xff]
          %v959 = vld [vmem:[%s946 + $0x60] sm:$0xff]
          %v960 = vld [vmem:[%s946 + $0x68] sm:$0xff]
          %v961 = vld [vmem:[%s946 + $0x70] sm:$0xff]
          %v962 = vld [vmem:[%s946 + $0x78] sm:$0xff]
          %963 = vmatpush.msra.mxu0 %v962
          %964 = vmatpush.msra.mxu0 %v961
          %965 = vmatpush.msra.mxu0 %v960
          %966 = vmatpush.msra.mxu0 %v959
          %967 = vmatpush.msra.mxu0 %v958
          %968 = vmatpush.msra.mxu0 %v957
          %969 = vmatpush.msra.mxu0 %v956
          %970 = vmatpush.msra.mxu0 %v955
          %971 = vmatpush.msra.mxu0 %v954
          %972 = vmatpush.msra.mxu0 %v953
          %973 = vmatpush.msra.mxu0 %v952
          %974 = vmatpush.msra.mxu0 %v951
          %975 = vmatpush.msra.mxu0 %v950
          %976 = vmatpush.msra.mxu0 %v949
          %977 = vmatpush.msra.mxu0 %v948
          %978 = vmatpush.msra.mxu0 %v947
          %979 = vmatmul.f32.gmra.mxu0 %v940
          %v980 = vpop.f32.mrf.mxu0
          %v981 = vadd.f32 0.0, %v980
          %982 = vmatmul.f32.gmra.mxu0 %v941
          %v983 = vpop.f32.mrf.mxu0
          %v984 = vadd.f32 0.0, %v983
          %985 = vmatmul.f32.gmra.mxu0 %v942
          %v986 = vpop.f32.mrf.mxu0
          %987 = vmatmul.f32.gmra.mxu0 %v943
          %v988 = vpop.f32.mrf.mxu0
          %v989 = vadd.f32 0.0, %v988
          %990 = vmatmul.f32.gmra.mxu0 %v944
          %v991 = vpop.f32.mrf.mxu0
          %v992 = vadd.f32 0.0, %v991
          %993 = vmatmul.f32.gmra.mxu0 %v945
          %v994 = vpop.f32.mrf.mxu0
          %995 = vdwg.mxu0
          %v996 = vadd.f32 %v934, %v981
          %v997 = vadd.f32 %v935, %v984
          %v998 = vadd.f32 %v936, %v989
          %v999 = vadd.f32 %v937, %v992
          %s1000 = sadd.s32 %s699, 26
          %s1001 = scalar_lea.vmem [#allocation2], %s1000
          %v1002 = vld [vmem:[%s1001] sm:$0xff]
          %v1003 = vld [vmem:[%s1001 + $0x8] sm:$0xff]
          %v1004 = vld [vmem:[%s1001 + $0x10] sm:$0xff]
          %v1005 = vld [vmem:[%s1001 + $0x18] sm:$0xff]
          %v1006 = vld [vmem:[%s1001 + $0x20] sm:$0xff]
          %v1007 = vld [vmem:[%s1001 + $0x28] sm:$0xff]
          %s1008 = scalar_lea.vmem %s6, 640
          %v1009 = vld [vmem:[%s1008] sm:$0xff]
          %v1010 = vld [vmem:[%s1008 + $0x8] sm:$0xff]
          %v1011 = vld [vmem:[%s1008 + $0x10] sm:$0xff]
          %v1012 = vld [vmem:[%s1008 + $0x18] sm:$0xff]
          %v1013 = vld [vmem:[%s1008 + $0x20] sm:$0xff]
          %v1014 = vld [vmem:[%s1008 + $0x28] sm:$0xff]
          %v1015 = vld [vmem:[%s1008 + $0x30] sm:$0xff]
          %v1016 = vld [vmem:[%s1008 + $0x38] sm:$0xff]
          %v1017 = vld [vmem:[%s1008 + $0x40] sm:$0xff]
          %v1018 = vld [vmem:[%s1008 + $0x48] sm:$0xff]
          %v1019 = vld [vmem:[%s1008 + $0x50] sm:$0xff]
          %v1020 = vld [vmem:[%s1008 + $0x58] sm:$0xff]
          %v1021 = vld [vmem:[%s1008 + $0x60] sm:$0xff]
          %v1022 = vld [vmem:[%s1008 + $0x68] sm:$0xff]
          %v1023 = vld [vmem:[%s1008 + $0x70] sm:$0xff]
          %v1024 = vld [vmem:[%s1008 + $0x78] sm:$0xff]
          %1025 = vmatpush.msra.mxu0 %v1024
          %1026 = vmatpush.msra.mxu0 %v1023
          %1027 = vmatpush.msra.mxu0 %v1022
          %1028 = vmatpush.msra.mxu0 %v1021
          %1029 = vmatpush.msra.mxu0 %v1020
          %1030 = vmatpush.msra.mxu0 %v1019
          %1031 = vmatpush.msra.mxu0 %v1018
          %1032 = vmatpush.msra.mxu0 %v1017
          %1033 = vmatpush.msra.mxu0 %v1016
          %1034 = vmatpush.msra.mxu0 %v1015
          %1035 = vmatpush.msra.mxu0 %v1014
          %1036 = vmatpush.msra.mxu0 %v1013
          %1037 = vmatpush.msra.mxu0 %v1012
          %1038 = vmatpush.msra.mxu0 %v1011
          %1039 = vmatpush.msra.mxu0 %v1010
          %1040 = vmatpush.msra.mxu0 %v1009
          %1041 = vmatmul.f32.gmra.mxu0 %v1002
          %v1042 = vpop.f32.mrf.mxu0
          %v1043 = vadd.f32 0.0, %v1042
          %1044 = vmatmul.f32.gmra.mxu0 %v1003
          %v1045 = vpop.f32.mrf.mxu0
          %v1046 = vadd.f32 0.0, %v1045
          %1047 = vmatmul.f32.gmra.mxu0 %v1004
          %v1048 = vpop.f32.mrf.mxu0
          %1049 = vmatmul.f32.gmra.mxu0 %v1005
          %v1050 = vpop.f32.mrf.mxu0
          %v1051 = vadd.f32 0.0, %v1050
          %1052 = vmatmul.f32.gmra.mxu0 %v1006
          %v1053 = vpop.f32.mrf.mxu0
          %v1054 = vadd.f32 0.0, %v1053
          %1055 = vmatmul.f32.gmra.mxu0 %v1007
          %v1056 = vpop.f32.mrf.mxu0
          %1057 = vdwg.mxu0
          %v1058 = vadd.f32 %v996, %v1043
          %v1059 = vadd.f32 %v997, %v1046
          %v1060 = vadd.f32 %v998, %v1051
          %v1061 = vadd.f32 %v999, %v1054
          %s1062 = sadd.s32 %s699, 48
          %s1063 = scalar_lea.vmem [#allocation2], %s1062
          %v1064 = vld [vmem:[%s1063] sm:$0xff]
          %v1065 = vld [vmem:[%s1063 + $0x8] sm:$0xff]
          %v1066 = vld [vmem:[%s1063 + $0x10] sm:$0xff]
          %v1067 = vld [vmem:[%s1063 + $0x18] sm:$0xff]
          %v1068 = vld [vmem:[%s1063 + $0x20] sm:$0xff]
          %v1069 = vld [vmem:[%s1063 + $0x28] sm:$0xff]
          %s1070 = scalar_lea.vmem %s6, 768
          %v1071 = vld [vmem:[%s1070] sm:$0xff]
          %v1072 = vld [vmem:[%s1070 + $0x8] sm:$0xff]
          %v1073 = vld [vmem:[%s1070 + $0x10] sm:$0xff]
          %v1074 = vld [vmem:[%s1070 + $0x18] sm:$0xff]
          %v1075 = vld [vmem:[%s1070 + $0x20] sm:$0xff]
          %v1076 = vld [vmem:[%s1070 + $0x28] sm:$0xff]
          %v1077 = vld [vmem:[%s1070 + $0x30] sm:$0xff]
          %v1078 = vld [vmem:[%s1070 + $0x38] sm:$0xff]
          %v1079 = vld [vmem:[%s1070 + $0x40] sm:$0xff]
          %v1080 = vld [vmem:[%s1070 + $0x48] sm:$0xff]
          %v1081 = vld [vmem:[%s1070 + $0x50] sm:$0xff]
          %v1082 = vld [vmem:[%s1070 + $0x58] sm:$0xff]
          %v1083 = vld [vmem:[%s1070 + $0x60] sm:$0xff]
          %v1084 = vld [vmem:[%s1070 + $0x68] sm:$0xff]
          %v1085 = vld [vmem:[%s1070 + $0x70] sm:$0xff]
          %v1086 = vld [vmem:[%s1070 + $0x78] sm:$0xff]
          %1087 = vmatpush.msra.mxu0 %v1086
          %1088 = vmatpush.msra.mxu0 %v1085
          %1089 = vmatpush.msra.mxu0 %v1084
          %1090 = vmatpush.msra.mxu0 %v1083
          %1091 = vmatpush.msra.mxu0 %v1082
          %1092 = vmatpush.msra.mxu0 %v1081
          %1093 = vmatpush.msra.mxu0 %v1080
          %1094 = vmatpush.msra.mxu0 %v1079
          %1095 = vmatpush.msra.mxu0 %v1078
          %1096 = vmatpush.msra.mxu0 %v1077
          %1097 = vmatpush.msra.mxu0 %v1076
          %1098 = vmatpush.msra.mxu0 %v1075
          %1099 = vmatpush.msra.mxu0 %v1074
          %1100 = vmatpush.msra.mxu0 %v1073
          %1101 = vmatpush.msra.mxu0 %v1072
          %1102 = vmatpush.msra.mxu0 %v1071
          %1103 = vmatmul.f32.gmra.mxu0 %v1064
          %v1104 = vpop.f32.mrf.mxu0
          %v1105 = vadd.f32 0.0, %v1104
          %1106 = vmatmul.f32.gmra.mxu0 %v1065
          %v1107 = vpop.f32.mrf.mxu0
          %v1108 = vadd.f32 0.0, %v1107
          %1109 = vmatmul.f32.gmra.mxu0 %v1066
          %v1110 = vpop.f32.mrf.mxu0
          %1111 = vmatmul.f32.gmra.mxu0 %v1067
          %v1112 = vpop.f32.mrf.mxu0
          %v1113 = vadd.f32 0.0, %v1112
          %1114 = vmatmul.f32.gmra.mxu0 %v1068
          %v1115 = vpop.f32.mrf.mxu0
          %v1116 = vadd.f32 0.0, %v1115
          %1117 = vmatmul.f32.gmra.mxu0 %v1069
          %v1118 = vpop.f32.mrf.mxu0
          %1119 = vdwg.mxu0
          %v1120 = vadd.f32 %v1058, %v1105
          %v1121 = vadd.f32 %v1059, %v1108
          %v1122 = vadd.f32 %v1060, %v1113
          %v1123 = vadd.f32 %v1061, %v1116
          %s1124 = sadd.s32 %s699, 49
          %s1125 = scalar_lea.vmem [#allocation2], %s1124
          %v1126 = vld [vmem:[%s1125] sm:$0xff]
          %v1127 = vld [vmem:[%s1125 + $0x8] sm:$0xff]
          %v1128 = vld [vmem:[%s1125 + $0x10] sm:$0xff]
          %v1129 = vld [vmem:[%s1125 + $0x18] sm:$0xff]
          %v1130 = vld [vmem:[%s1125 + $0x20] sm:$0xff]
          %v1131 = vld [vmem:[%s1125 + $0x28] sm:$0xff]
          %s1132 = scalar_lea.vmem %s6, 896
          %v1133 = vld [vmem:[%s1132] sm:$0xff]
          %v1134 = vld [vmem:[%s1132 + $0x8] sm:$0xff]
          %v1135 = vld [vmem:[%s1132 + $0x10] sm:$0xff]
          %v1136 = vld [vmem:[%s1132 + $0x18] sm:$0xff]
          %v1137 = vld [vmem:[%s1132 + $0x20] sm:$0xff]
          %v1138 = vld [vmem:[%s1132 + $0x28] sm:$0xff]
          %v1139 = vld [vmem:[%s1132 + $0x30] sm:$0xff]
          %v1140 = vld [vmem:[%s1132 + $0x38] sm:$0xff]
          %v1141 = vld [vmem:[%s1132 + $0x40] sm:$0xff]
          %v1142 = vld [vmem:[%s1132 + $0x48] sm:$0xff]
          %v1143 = vld [vmem:[%s1132 + $0x50] sm:$0xff]
          %v1144 = vld [vmem:[%s1132 + $0x58] sm:$0xff]
          %v1145 = vld [vmem:[%s1132 + $0x60] sm:$0xff]
          %v1146 = vld [vmem:[%s1132 + $0x68] sm:$0xff]
          %v1147 = vld [vmem:[%s1132 + $0x70] sm:$0xff]
          %v1148 = vld [vmem:[%s1132 + $0x78] sm:$0xff]
          %1149 = vmatpush.msra.mxu0 %v1148
          %1150 = vmatpush.msra.mxu0 %v1147
          %1151 = vmatpush.msra.mxu0 %v1146
          %1152 = vmatpush.msra.mxu0 %v1145
          %1153 = vmatpush.msra.mxu0 %v1144
          %1154 = vmatpush.msra.mxu0 %v1143
          %1155 = vmatpush.msra.mxu0 %v1142
          %1156 = vmatpush.msra.mxu0 %v1141
          %1157 = vmatpush.msra.mxu0 %v1140
          %1158 = vmatpush.msra.mxu0 %v1139
          %1159 = vmatpush.msra.mxu0 %v1138
          %1160 = vmatpush.msra.mxu0 %v1137
          %1161 = vmatpush.msra.mxu0 %v1136
          %1162 = vmatpush.msra.mxu0 %v1135
          %1163 = vmatpush.msra.mxu0 %v1134
          %1164 = vmatpush.msra.mxu0 %v1133
          %1165 = vmatmul.f32.gmra.mxu0 %v1126
          %v1166 = vpop.f32.mrf.mxu0
          %v1167 = vadd.f32 0.0, %v1166
          %1168 = vmatmul.f32.gmra.mxu0 %v1127
          %v1169 = vpop.f32.mrf.mxu0
          %v1170 = vadd.f32 0.0, %v1169
          %1171 = vmatmul.f32.gmra.mxu0 %v1128
          %v1172 = vpop.f32.mrf.mxu0
          %1173 = vmatmul.f32.gmra.mxu0 %v1129
          %v1174 = vpop.f32.mrf.mxu0
          %v1175 = vadd.f32 0.0, %v1174
          %1176 = vmatmul.f32.gmra.mxu0 %v1130
          %v1177 = vpop.f32.mrf.mxu0
          %v1178 = vadd.f32 0.0, %v1177
          %1179 = vmatmul.f32.gmra.mxu0 %v1131
          %v1180 = vpop.f32.mrf.mxu0
          %1181 = vdwg.mxu0
          %v1182 = vadd.f32 %v1120, %v1167
          %v1183 = vadd.f32 %v1121, %v1170
          %v1184 = vadd.f32 %v1122, %v1175
          %v1185 = vadd.f32 %v1123, %v1178
          %s1186 = sadd.s32 %s699, 50
          %s1187 = scalar_lea.vmem [#allocation2], %s1186
          %v1188 = vld [vmem:[%s1187] sm:$0xff]
          %v1189 = vld [vmem:[%s1187 + $0x8] sm:$0xff]
          %v1190 = vld [vmem:[%s1187 + $0x10] sm:$0xff]
          %v1191 = vld [vmem:[%s1187 + $0x18] sm:$0xff]
          %v1192 = vld [vmem:[%s1187 + $0x20] sm:$0xff]
          %v1193 = vld [vmem:[%s1187 + $0x28] sm:$0xff]
          %s1194 = scalar_lea.vmem %s6, 1024
          %v1195 = vld [vmem:[%s1194] sm:$0xff]
          %v1196 = vld [vmem:[%s1194 + $0x8] sm:$0xff]
          %v1197 = vld [vmem:[%s1194 + $0x10] sm:$0xff]
          %v1198 = vld [vmem:[%s1194 + $0x18] sm:$0xff]
          %v1199 = vld [vmem:[%s1194 + $0x20] sm:$0xff]
          %v1200 = vld [vmem:[%s1194 + $0x28] sm:$0xff]
          %v1201 = vld [vmem:[%s1194 + $0x30] sm:$0xff]
          %v1202 = vld [vmem:[%s1194 + $0x38] sm:$0xff]
          %v1203 = vld [vmem:[%s1194 + $0x40] sm:$0xff]
          %v1204 = vld [vmem:[%s1194 + $0x48] sm:$0xff]
          %v1205 = vld [vmem:[%s1194 + $0x50] sm:$0xff]
          %v1206 = vld [vmem:[%s1194 + $0x58] sm:$0xff]
          %v1207 = vld [vmem:[%s1194 + $0x60] sm:$0xff]
          %v1208 = vld [vmem:[%s1194 + $0x68] sm:$0xff]
          %v1209 = vld [vmem:[%s1194 + $0x70] sm:$0xff]
          %v1210 = vld [vmem:[%s1194 + $0x78] sm:$0xff]
          %1211 = vmatpush.msra.mxu0 %v1210
          %1212 = vmatpush.msra.mxu0 %v1209
          %1213 = vmatpush.msra.mxu0 %v1208
          %1214 = vmatpush.msra.mxu0 %v1207
          %1215 = vmatpush.msra.mxu0 %v1206
          %1216 = vmatpush.msra.mxu0 %v1205
          %1217 = vmatpush.msra.mxu0 %v1204
          %1218 = vmatpush.msra.mxu0 %v1203
          %1219 = vmatpush.msra.mxu0 %v1202
          %1220 = vmatpush.msra.mxu0 %v1201
          %1221 = vmatpush.msra.mxu0 %v1200
          %1222 = vmatpush.msra.mxu0 %v1199
          %1223 = vmatpush.msra.mxu0 %v1198
          %1224 = vmatpush.msra.mxu0 %v1197
          %1225 = vmatpush.msra.mxu0 %v1196
          %1226 = vmatpush.msra.mxu0 %v1195
          %1227 = vmatmul.f32.gmra.mxu0 %v1188
          %v1228 = vpop.f32.mrf.mxu0
          %v1229 = vadd.f32 0.0, %v1228
          %1230 = vmatmul.f32.gmra.mxu0 %v1189
          %v1231 = vpop.f32.mrf.mxu0
          %v1232 = vadd.f32 0.0, %v1231
          %1233 = vmatmul.f32.gmra.mxu0 %v1190
          %v1234 = vpop.f32.mrf.mxu0
          %1235 = vmatmul.f32.gmra.mxu0 %v1191
          %v1236 = vpop.f32.mrf.mxu0
          %v1237 = vadd.f32 0.0, %v1236
          %1238 = vmatmul.f32.gmra.mxu0 %v1192
          %v1239 = vpop.f32.mrf.mxu0
          %v1240 = vadd.f32 0.0, %v1239
          %1241 = vmatmul.f32.gmra.mxu0 %v1193
          %v1242 = vpop.f32.mrf.mxu0
          %1243 = vdwg.mxu0
          %v1244 = vadd.f32 %v1182, %v1229
          %v1245 = vadd.f32 %v1183, %v1232
          %v1246 = vadd.f32 %v1184, %v1237
          %v1247 = vadd.f32 %v1185, %v1240
          %v1249 = vperm.slane %v692, 0
          %v1251 = vadd.f32 %v1244, %v1249
          %v1252 = vadd.f32 %v1245, %v1249
          %v1253 = vadd.f32 %v1246, %v1249
          %v1254 = vadd.f32 %v1247, %v1249
          %s1255 = smul.u32 %s694, 2
          %s1256 = smul.u32 %s1255, 16
          %s1257 = scalar_lea.vmem %s337, %s1256 [#allocation3]
          %vm1258 = vcmask 261120
          %1259 = vst.msk [vmem:[%s1257] sm:$0xff] %vm1258, %v1251
          %1260 = vst.msk [vmem:[%s1257 + $0x8] sm:$0xff] %vm1258, %v1252
          %1261 = vst.msk [vmem:[%s1257 + $0x10] sm:$0xff] %vm1258, %v1253
          %1262 = vst.msk [vmem:[%s1257 + $0x18] sm:$0xff] %vm1258, %v1254
        $region64: #{tpu_custom_call.1} parent=51 // loop_footer
          %s698 = sadd.s32 1, %s694
        $region65: #{tpu_custom_call.1} parent=51 // loop_footer_branch
          %693 = sbr.rel target = $region61
        $region66: #{tpu_custom_call.1} parent=51 // loop_exit
          _
        %s1263 = sand.u32 %s224, 1
        %s1264 = scalar_lea.sflag [#allocation4], %s1263
        %s1265 = sand.u32 %s224, 1
        %s1266 = smul.addr %s1265, 128
        %s1267 = scalar_lea.vmem [#allocation3], %s1266
        // Predicated region
        $region67: #{tpu_custom_call.1} parent=51 // pred_check
          %p1268 = pneg %p234
        $region68: #{tpu_custom_call.1} parent=51 // pred_check_branch
          %1270 = sbr.rel (%p1268) target = $region70
        $region69: #{tpu_custom_call.1} parent=51 // pred_region
          %s1271 = smul.u32 8, %s27
          %1273 = vsyncadd %s1264, 0
          %s1274 = smul.addr %s1271, 2
          %s1275 = smul.addr %s26, 32
          %s1276 = sadd.s32 %s1274, %s1275
          %s1277 = smul.addr %s1276, 8
          %s1278 = scalar_lea.hbm %s8, %s1277
          %s1279 = sshll.u32 %s1267, 4
          %s1280 = int_to_ptr.vmem [resolvable:$true] %s1279
          %s1281 = sshll.u32 %s1278, 4
          %s1282 = int_to_ptr.hbm [resolvable:$true] %s1281
          %1287 = dma.vmem_to_hbm [thread:$0]  %s1280, 2048, %s1282, %s1264, 128, 128, 8
        $region70: #{tpu_custom_call.1} parent=51 // pred_fallthru
          _
      $region52: #{tpu_custom_call.1} parent=5 // pred_fallthru
        _
      %p1288 = scmp.le.s32.totalorder 2, %s17
      // Predicated region
      $region71: #{tpu_custom_call.1} parent=5 // pred_check
        %p1289 = pneg %p1288
      $region72: #{tpu_custom_call.1} parent=5 // pred_check_branch
        %1291 = sbr.rel (%p1289) target = $region74
      $region73: #{tpu_custom_call.1} parent=5 // pred_region
        %s1292 = ssub.s32 %s17, 2
        // Predicated region
        $region75: #{tpu_custom_call.1} parent=73 // pred_check
          %p1293 = pneg %p240
        $region76: #{tpu_custom_call.1} parent=73 // pred_check_branch
          %1295 = sbr.rel (%p1293) target = $region78
        $region77: #{tpu_custom_call.1} parent=73 // pred_region
          %s1296 = sand.u32 %s225, 1
          %s1297 = scalar_lea.sflag [#allocation4], %s1296
          %s1298 = sand.u32 %s225, 1
          %s1299 = smul.addr %s1298, 128
          %s1300 = scalar_lea.vmem [#allocation3], %s1299
          %1302 = dma.done %s1297, 2048
        $region78: #{tpu_custom_call.1} parent=73 // pred_fallthru
          _
      $region74: #{tpu_custom_call.1} parent=5 // pred_fallthru
        _
    $region6: #{tpu_custom_call.1} parent=1 // loop_footer
      %s21 = sadd.s32 1, %s17
    $region7: #{tpu_custom_call.1} parent=1 // loop_footer_branch
      %16 = sbr.rel target = $region3
    $region8: #{tpu_custom_call.1} parent=1 // loop_exit
      _
    %1303 = vsyncpa [#allocation4], 1
    %s1304 = scalar_lea.sflag [#allocation4], 1
    %1305 = vsyncpa %s1304, 1

</llo_original>
